<compile_context>
chip_gen: v5e
topology: v5e:2x2
jax: 0.10.0
libtpu: 0.0.40
codegen_flags: <defaults>
</compile_context>

<pallas_src>
import functools

import numpy as np
import jax
import jax.numpy as jnp
from jax.experimental import pallas as pl
from jax.experimental.pallas import tpu as pltpu


_SQRT_HALF = np.float32(1.0 / np.sqrt(2.0))


def _pick_block(n, cap=1024):
    """Largest power-of-two divisor of n that is <= cap (falls back to n)."""
    for c in (1024, 512, 256, 128, 64, 32, 16, 8):
        if c <= cap and c <= n and n % c == 0:
            return c
    return n


def _layernorm_f32(x, g, b, eps):
    mean = jnp.mean(x, axis=-1, keepdims=True)
    var = jnp.mean((x - mean) ** 2, axis=-1, keepdims=True)   # biased var (PyTorch)
    y = (x - mean) * jax.lax.rsqrt(var + eps)
    return y * g + b


# ----------------------------------------------------------------------------
# Kernel 1: fused LayerNorm1 + QKV projection  ->  q, k, v  (each (rows, C))
# ----------------------------------------------------------------------------
def _ln_qkv_kernel(x_ref, g_ref, b_ref, w_ref, bias_ref, q_ref, k_ref, v_ref,
                   *, eps, dim):
    x = x_ref[...].astype(jnp.float32)
    xn = _layernorm_f32(x, g_ref[...].astype(jnp.float32),
                        b_ref[...].astype(jnp.float32), eps)
    y = jnp.dot(xn.astype(w_ref.dtype), w_ref[...],
                preferred_element_type=jnp.float32)
    y = y + bias_ref[...].astype(jnp.float32)
    q_ref[...] = y[:, :dim].astype(q_ref.dtype)
    k_ref[...] = y[:, dim:2 * dim].astype(k_ref.dtype)
    v_ref[...] = y[:, 2 * dim:].astype(v_ref.dtype)


def ln_qkv(x, gamma, beta, w, b, *, eps=1e-5, block_rows=512):
    N, C = x.shape
    Cout = w.shape[1]
    assert N % block_rows == 0
    row = pl.BlockSpec((block_rows, C), lambda i: (i, 0))
    return pl.pallas_call(
        functools.partial(_ln_qkv_kernel, eps=eps, dim=C),
        out_shape=tuple(jax.ShapeDtypeStruct((N, C), x.dtype) for _ in range(3)),
        grid=(N // block_rows,),
        in_specs=[row,
                  pl.BlockSpec((1, C), lambda i: (0, 0)),
                  pl.BlockSpec((1, C), lambda i: (0, 0)),
                  pl.BlockSpec((C, Cout), lambda i: (0, 0)),
                  pl.BlockSpec((1, Cout), lambda i: (0, 0))],
        out_specs=tuple(pl.BlockSpec((block_rows, C), lambda i: (i, 0))
                        for _ in range(3)),
        compiler_params=pltpu.CompilerParams(dimension_semantics=("parallel",)),
    )(x, gamma.reshape(1, C), beta.reshape(1, C), w, b.reshape(1, Cout))


# ----------------------------------------------------------------------------
# Kernel 2: neighborhood attention, all heads fused, per (query-tile, batch)
# ----------------------------------------------------------------------------
def _na_attn_kernel(q_ref, k_ref, v_ref, bias_ref, o_ref, *, scale, num_heads,
                    head_dim):
    q = q_ref[0].astype(jnp.float32) * scale          # (TQ, C)
    k = k_ref[0].astype(jnp.float32)                  # (P,  C)
    v = v_ref[0].astype(jnp.float32)                  # (P,  C)
    tq, c = q.shape
    lane = jax.lax.broadcasted_iota(jnp.int32, (1, c), 1)
    acc = jnp.zeros((tq, c), jnp.float32)
    for h in range(num_heads):                        # static -> unrolled
        mask = (lane >= h * head_dim) & (lane < (h + 1) * head_dim)
        qh = jnp.where(mask, q, 0.0)                  # zero other heads' channels:
        # contraction over all C then equals the per-head Dh contraction.
        s = jax.lax.dot_general(qh, k, (((1,), (1,)), ((), ())),
                                preferred_element_type=jnp.float32)   # (TQ, P)
        s = s + bias_ref[h].astype(jnp.float32)       # rpb inside window, -1e30 outside
        m = jnp.max(s, axis=-1, keepdims=True)
        p = jnp.exp(s - m)
        attn = p * pl.reciprocal(jnp.sum(p, axis=-1, keepdims=True), approx=True)
        vh = jnp.where(mask, v, 0.0)
        acc = acc + jnp.dot(attn, vh, preferred_element_type=jnp.float32)
    o_ref[0] = acc.astype(o_ref.dtype)                # single lane-dense (TQ, C) store


def na2d_attention(q, k, v, bias, *, scale, num_heads, block_q=128):
    B, P, C = q.shape
    nH = bias.shape[0]
    head_dim = C // num_heads
    tq = _pick_block(P, cap=block_q)
    n_q = P // tq
    qo_spec = pl.BlockSpec((1, tq, C), lambda qi, b: (b, qi, 0))
    kv_spec = pl.BlockSpec((1, P, C), lambda qi, b: (b, 0, 0))
    bias_spec = pl.BlockSpec((nH, tq, P), lambda qi, b: (0, qi, 0))  # independent of b
    return pl.pallas_call(
        functools.partial(_na_attn_kernel, scale=scale, num_heads=num_heads,
                          head_dim=head_dim),
        out_shape=jax.ShapeDtypeStruct((B, P, C), q.dtype),
        # batch innermost: the bias block index does not change across consecutive
        # grid steps, so the pipeline keeps it resident instead of re-fetching per b.
        grid=(n_q, B),
        in_specs=[qo_spec, kv_spec, kv_spec, bias_spec],
        out_specs=qo_spec,
        compiler_params=pltpu.CompilerParams(
            dimension_semantics=("parallel", "parallel")),
    )(q, k, v, bias)


# ----------------------------------------------------------------------------
# Kernel 3: output projection + residual
# ----------------------------------------------------------------------------
def _proj_residual_kernel(x_ref, w_ref, b_ref, r_ref, o_ref):
    y = jnp.dot(x_ref[...].astype(w_ref.dtype), w_ref[...],
                preferred_element_type=jnp.float32)
    y = y + b_ref[...].astype(jnp.float32) + r_ref[...].astype(jnp.float32)
    o_ref[...] = y.astype(o_ref.dtype)


def proj_residual(x, w, b, residual, *, block_rows=512):
    N, Cin = x.shape
    Cout = w.shape[1]
    assert N % block_rows == 0
    row_in = pl.BlockSpec((block_rows, Cin), lambda i: (i, 0))
    row_out = pl.BlockSpec((block_rows, Cout), lambda i: (i, 0))
    return pl.pallas_call(
        _proj_residual_kernel,
        out_shape=jax.ShapeDtypeStruct((N, Cout), x.dtype),
        grid=(N // block_rows,),
        in_specs=[row_in,
                  pl.BlockSpec((Cin, Cout), lambda i: (0, 0)),
                  pl.BlockSpec((1, Cout), lambda i: (0, 0)),
                  row_out],
        out_specs=row_out,
        compiler_params=pltpu.CompilerParams(dimension_semantics=("parallel",)),
    )(x, w, b.reshape(1, Cout), residual)


# ----------------------------------------------------------------------------
# Kernel 4: fused LayerNorm2 + fc1 + GELU + fc2 + residual (whole MLP branch)
# ----------------------------------------------------------------------------
def _ln_mlp_kernel(x_ref, g_ref, b_ref, w1_ref, b1_ref, w2_ref, b2_ref, o_ref,
                   *, eps):
    x = x_ref[...].astype(jnp.float32)                       # also the residual
    xn = _layernorm_f32(x, g_ref[...].astype(jnp.float32),
                        b_ref[...].astype(jnp.float32), eps)
    h = jnp.dot(xn.astype(w1_ref.dtype), w1_ref[...],
                preferred_element_type=jnp.float32) + b1_ref[...].astype(jnp.float32)
    h = 0.5 * h * (1.0 + jax.lax.erf(h * _SQRT_HALF))        # exact GELU (torch.nn.GELU)
    y = jnp.dot(h.astype(w2_ref.dtype), w2_ref[...],
                preferred_element_type=jnp.float32) + b2_ref[...].astype(jnp.float32)
    o_ref[...] = (x + y).astype(o_ref.dtype)


def ln_mlp(x, gamma, beta, w1, b1, w2, b2, *, eps=1e-5, block_rows=512):
    N, C = x.shape
    Hd = w1.shape[1]
    assert N % block_rows == 0
    row = pl.BlockSpec((block_rows, C), lambda i: (i, 0))
    return pl.pallas_call(
        functools.partial(_ln_mlp_kernel, eps=eps),
        out_shape=jax.ShapeDtypeStruct((N, C), x.dtype),
        grid=(N // block_rows,),
        in_specs=[row,
                  pl.BlockSpec((1, C), lambda i: (0, 0)),
                  pl.BlockSpec((1, C), lambda i: (0, 0)),
                  pl.BlockSpec((C, Hd), lambda i: (0, 0)),
                  pl.BlockSpec((1, Hd), lambda i: (0, 0)),
                  pl.BlockSpec((Hd, C), lambda i: (0, 0)),
                  pl.BlockSpec((1, C), lambda i: (0, 0))],
        out_specs=row,
        compiler_params=pltpu.CompilerParams(dimension_semantics=("parallel",)),
    )(x, gamma.reshape(1, C), beta.reshape(1, C),
      w1, b1.reshape(1, Hd), w2, b2.reshape(1, C))


# ----------------------------------------------------------------------------
# NATTEN neighborhood / relative-position-bias index math (host-side, done once).
# Matches natten's get_window_start / get_pb_start (with dilation support).
# ----------------------------------------------------------------------------
def _window_start(i, L, K, dil):
    nbh = K // 2
    if dil <= 1:
        return max(i - nbh, 0) + ((L - i - nbh - 1) if (i + nbh >= L) else 0)
    ni = i - nbh * dil
    if ni < 0:
        return i % dil
    if i + nbh * dil >= L:
        imodd = i % dil
        a = (L // dil) * dil
        b = L - a
        if imodd < b:
            return L - b + imodd - 2 * nbh * dil
        return a + imodd - K * dil
    return ni


def _pb_start(i, L, K, dil):
    nbh = K // 2
    if dil <= 1:
        return nbh + ((nbh - i) if i < nbh else 0) + \
            ((L - i - 1 - nbh) if (i + nbh >= L) else 0)
    if i - nbh * dil < 0:
        return K - 1 - (i // dil)
    if i + nbh * dil >= L:
        return (L - i - 1) // dil
    return nbh


def build_na2d_bias_np(rpb, H, W, K, dil):
    """Dense additive bias (f32): rpb inside the dilated KxK neighborhood, -1e30 outside."""
    rpb_np = np.asarray(rpb)
    nH = rpb_np.shape[0]
    bias = np.full((nH, H * W, H * W), -1e30, dtype=np.float32)
    ws_i = [_window_start(i, H, K, dil) for i in range(H)]
    ws_j = [_window_start(j, W, K, dil) for j in range(W)]
    pb_i = [_pb_start(i, H, K, dil) for i in range(H)]
    pb_j = [_pb_start(j, W, K, dil) for j in range(W)]
    for i in range(H):
        for j in range(W):
            qidx = i * W + j
            for ki in range(K):
                kr = ws_i[i] + ki * dil
                for kj in range(K):
                    kc = ws_j[j] + kj * dil
                    bias[:, qidx, kr * W + kc] = rpb_np[:, pb_i[i] + ki,
                                                        pb_j[j] + kj]
    return bias


# ----------------------------------------------------------------------------
# NSABlock forward
# ----------------------------------------------------------------------------
def nsa_block_forward(x, params, na_bias, *, num_heads, scale):
    B, H, W, C = x.shape
    P = H * W
    N = B * P
    xf = x.reshape(N, C)
    block_rows = _pick_block(N, cap=1024)

    # ---- attention branch: x1 = x + proj(NA(norm1(x))) ----
    q, k, v = ln_qkv(xf, params["g1"], params["b1"], params["w_qkv"],
                     params["b_qkv"], block_rows=block_rows)
    q = q.reshape(B, P, C)                     # free reshapes, no transposes
    k = k.reshape(B, P, C)
    v = v.reshape(B, P, C)
    attn = na2d_attention(q, k, v, na_bias, scale=scale, num_heads=num_heads)
    x1 = proj_residual(attn.reshape(N, C), params["w_proj"], params["b_proj"],
                       xf, block_rows=block_rows)

    # ---- MLP branch: out = x1 + fc2(gelu(fc1(norm2(x1)))) ----
    out = ln_mlp(x1, params["g2"], params["b2"], params["w_fc1"], params["b_fc1"],
                 params["w_fc2"], params["b_fc2"], block_rows=block_rows)
    return out.reshape(B, H, W, C)


# ----------------------------------------------------------------------------
# Pure-JAX reference (for a loose correctness check)
# ----------------------------------------------------------------------------
def nsa_block_reference(x, params, bias_f32, *, num_heads, scale):
    B, H, W, C = x.shape
    P = H * W
    Dh = C // num_heads

    def ln(t, g, b):
        m = jnp.mean(t, -1, keepdims=True)
        v = jnp.mean((t - m) ** 2, -1, keepdims=True)
        return (t - m) * jax.lax.rsqrt(v + 1e-5) * g + b

    xf = x.reshape(B, P, C).astype(jnp.float32)
    h = ln(xf, params["g1"], params["b1"])
    qkv = h @ params["w_qkv"] + params["b_qkv"]
    qkv = qkv.reshape(B, P, 3, num_heads, Dh).transpose(2, 0, 3, 1, 4)
    q, k, v = qkv[0] * scale, qkv[1], qkv[2]
    s = jnp.einsum("bhqd,bhkd->bhqk", q, k) + bias_f32[None]
    a = jax.nn.softmax(s, axis=-1)
    o = jnp.einsum("bhqk,bhkd->bhqd", a, v).transpose(0, 2, 1, 3).reshape(B, P, C)
    x1 = xf + o @ params["w_proj"] + params["b_proj"]
    h2 = ln(x1, params["g2"], params["b2"])
    h2 = h2 @ params["w_fc1"] + params["b_fc1"]
    h2 = 0.5 * h2 * (1.0 + jax.lax.erf(h2 * _SQRT_HALF))
    out = x1 + h2 @ params["w_fc2"] + params["b_fc2"]
    return out.reshape(B, H, W, C)


if __name__ == "__main__":
    # dilation=2 with kernel_size=7 requires spatial >= 14 -> use 16x16.
    B, H, W = 2, 16, 16
    dim, num_heads, kernel_size, dilation = 32, 4, 7, 2
    mlp_ratio = 4.0
    head_dim = dim // num_heads
    scale = head_dim ** -0.5
    hidden = int(dim * mlp_ratio)

    key = jax.random.PRNGKey(0)
    ks = jax.random.split(key, 12)
    params = dict(
        g1=jnp.ones((dim,), jnp.float32),
        b1=jnp.zeros((dim,), jnp.float32),
        w_qkv=0.02 * jax.random.normal(ks[0], (dim, 3 * dim), jnp.float32),
        b_qkv=0.02 * jax.random.normal(ks[1], (3 * dim,), jnp.float32),
        rpb=0.02 * jax.random.normal(
            ks[2], (num_heads, 2 * kernel_size - 1, 2 * kernel_size - 1),
            jnp.float32),
        w_proj=0.02 * jax.random.normal(ks[3], (dim, dim), jnp.float32),
        b_proj=0.02 * jax.random.normal(ks[4], (dim,), jnp.float32),
        g2=jnp.ones((dim,), jnp.float32),
        b2=jnp.zeros((dim,), jnp.float32),
        w_fc1=0.02 * jax.random.normal(ks[5], (dim, hidden), jnp.float32),
        b_fc1=0.02 * jax.random.normal(ks[6], (hidden,), jnp.float32),
        w_fc2=0.02 * jax.random.normal(ks[7], (hidden, dim), jnp.float32),
        b_fc2=0.02 * jax.random.normal(ks[8], (dim,), jnp.float32),
    )

    x = jax.random.normal(ks[9], (B, H, W, dim), jnp.float32)

    bias_np = build_na2d_bias_np(params["rpb"], H, W, kernel_size, dilation)
    na_bias_bf16 = jnp.asarray(bias_np, dtype=jnp.bfloat16)   # kernel-side bias (halved DMA)
    na_bias_f32 = jnp.asarray(bias_np)                        # reference bias

    out = nsa_block_forward(x, params, na_bias_bf16, num_heads=num_heads, scale=scale)
    out = jax.block_until_ready(out)

    ref = nsa_block_reference(x, params, na_bias_f32, num_heads=num_heads, scale=scale)
    ref = jax.block_until_ready(ref)

    assert out.shape == (B, H, W, dim)
    assert bool(jnp.all(jnp.isfinite(out)))
    max_err = float(jnp.max(jnp.abs(out - ref)))
    # loose tolerance: bf16 rpb rounding + approximate-reciprocal softmax normalization
    assert max_err < 5e-2, f"max abs error vs reference: {max_err}"
    print("KERNEL_OK")
</pallas_src>

<mosaic_0001>
module attributes {stable_mosaic.version = 11 : i64} {
  func.func @_ln_qkv_kernel(%arg0: i32, %arg1: memref<512x32xf32, #tpu.memory_space<vmem>>, %arg2: memref<1x32xf32, #tpu.memory_space<vmem>>, %arg3: memref<1x32xf32, #tpu.memory_space<vmem>>, %arg4: memref<32x96xf32, #tpu.memory_space<vmem>>, %arg5: memref<1x96xf32, #tpu.memory_space<vmem>>, %arg6: memref<512x32xf32, #tpu.memory_space<vmem>>, %arg7: memref<512x32xf32, #tpu.memory_space<vmem>>, %arg8: memref<512x32xf32, #tpu.memory_space<vmem>>) attributes {dimension_semantics = [#tpu.dimension_semantics<parallel>], iteration_bounds = array<i64: 1>, scalar_prefetch = 0 : i64, scratch_operands = 0 : i64, tpu.core_type = #tpu.core_type<tc>, window_params = [{transform_indices = @transform_0, window_bounds = array<i64: 512, 32>}, {pipeline_mode = #tpu.pipeline_mode<synchronous>, transform_indices = @transform_1, window_bounds = array<i64: 1, 32>}, {pipeline_mode = #tpu.pipeline_mode<synchronous>, transform_indices = @transform_2, window_bounds = array<i64: 1, 32>}, {pipeline_mode = #tpu.pipeline_mode<synchronous>, transform_indices = @transform_3, window_bounds = array<i64: 32, 96>}, {pipeline_mode = #tpu.pipeline_mode<synchronous>, transform_indices = @transform_4, window_bounds = array<i64: 1, 96>}, {transform_indices = @transform_5, window_bounds = array<i64: 512, 32>}, {transform_indices = @transform_6, window_bounds = array<i64: 512, 32>}, {transform_indices = @transform_7, window_bounds = array<i64: 512, 32>}]} {
    %c0 = arith.constant 0 : index
    %c0_0 = arith.constant 0 : index
    %0 = vector.load %arg1[%c0, %c0_0] : memref<512x32xf32, #tpu.memory_space<vmem>>, vector<512x32xf32>
    %c0_1 = arith.constant 0 : index
    %c0_2 = arith.constant 0 : index
    %1 = vector.load %arg2[%c0_1, %c0_2] : memref<1x32xf32, #tpu.memory_space<vmem>>, vector<1x32xf32>
    %c0_3 = arith.constant 0 : index
    %c0_4 = arith.constant 0 : index
    %2 = vector.load %arg3[%c0_3, %c0_4] : memref<1x32xf32, #tpu.memory_space<vmem>>, vector<1x32xf32>
    %cst = arith.constant dense<0.000000e+00> : vector<512xf32>
    %3 = vector.multi_reduction <add>, %0, %cst [1] : vector<512x32xf32> to vector<512xf32>
    %4 = vector.shape_cast %3 : vector<512xf32> to vector<512x1xf32>
    %cst_5 = arith.constant 3.200000e+01 : f32
    %5 = vector.broadcast %cst_5 : f32 to vector<512x1xf32>
    %6 = arith.divf %4, %5 : vector<512x1xf32>
    %7 = vector.broadcast %6 : vector<512x1xf32> to vector<512x32xf32>
    %8 = arith.subf %0, %7 : vector<512x32xf32>
    %9 = arith.mulf %8, %8 : vector<512x32xf32>
    %cst_6 = arith.constant dense<0.000000e+00> : vector<512xf32>
    %10 = vector.multi_reduction <add>, %9, %cst_6 [1] : vector<512x32xf32> to vector<512xf32>
    %11 = vector.shape_cast %10 : vector<512xf32> to vector<512x1xf32>
    %cst_7 = arith.constant 3.200000e+01 : f32
    %12 = vector.broadcast %cst_7 : f32 to vector<512x1xf32>
    %13 = arith.divf %11, %12 : vector<512x1xf32>
    %14 = vector.broadcast %6 : vector<512x1xf32> to vector<512x32xf32>
    %15 = arith.subf %0, %14 : vector<512x32xf32>
    %cst_8 = arith.constant 9.99999974E-6 : f32
    %16 = vector.broadcast %cst_8 : f32 to vector<512x1xf32>
    %17 = arith.addf %13, %16 : vector<512x1xf32>
    %18 = math.rsqrt %17 : vector<512x1xf32>
    %19 = vector.broadcast %18 : vector<512x1xf32> to vector<512x32xf32>
    %20 = arith.mulf %15, %19 : vector<512x32xf32>
    %21 = vector.broadcast %1 : vector<1x32xf32> to vector<512x32xf32>
    %22 = arith.mulf %20, %21 : vector<512x32xf32>
    %23 = vector.broadcast %2 : vector<1x32xf32> to vector<512x32xf32>
    %24 = arith.addf %22, %23 : vector<512x32xf32>
    %c0_9 = arith.constant 0 : index
    %c0_10 = arith.constant 0 : index
    %25 = vector.load %arg4[%c0_9, %c0_10] : memref<32x96xf32, #tpu.memory_space<vmem>>, vector<32x96xf32>
    %cst_11 = arith.constant dense<0.000000e+00> : vector<512x96xf32>
    %26 = tpu.matmul %24, %25, %cst_11 {dimension_numbers = #tpu.dot_dimension_numbers<[1], [0], [0], [1], [0, 0, 1, 1], [], []>} : vector<512x32xf32>, vector<32x96xf32>, vector<512x96xf32> -> vector<512x96xf32>
    %c0_12 = arith.constant 0 : index
    %c0_13 = arith.constant 0 : index
    %27 = vector.load %arg5[%c0_12, %c0_13] : memref<1x96xf32, #tpu.memory_space<vmem>>, vector<1x96xf32>
    %28 = vector.broadcast %27 : vector<1x96xf32> to vector<512x96xf32>
    %29 = arith.addf %26, %28 : vector<512x96xf32>
    %30 = vector.extract_strided_slice %29 {offsets = [0, 0], sizes = [512, 32], strides = [1, 1]} : vector<512x96xf32> to vector<512x32xf32>
    %c0_14 = arith.constant 0 : index
    %c0_15 = arith.constant 0 : index
    %31 = vector.load %arg6[%c0_14, %c0_15] : memref<512x32xf32, #tpu.memory_space<vmem>>, vector<512x32xf32>
    tpu.vector_store %arg6[%c0_14, %c0_15], %30 {strides = array<i32>} : memref<512x32xf32, #tpu.memory_space<vmem>>, vector<512x32xf32>,
    %32 = vector.extract_strided_slice %29 {offsets = [0, 32], sizes = [512, 32], strides = [1, 1]} : vector<512x96xf32> to vector<512x32xf32>
    %c0_16 = arith.constant 0 : index
    %c0_17 = arith.constant 0 : index
    %33 = vector.load %arg7[%c0_16, %c0_17] : memref<512x32xf32, #tpu.memory_space<vmem>>, vector<512x32xf32>
    tpu.vector_store %arg7[%c0_16, %c0_17], %32 {strides = array<i32>} : memref<512x32xf32, #tpu.memory_space<vmem>>, vector<512x32xf32>,
    %34 = vector.extract_strided_slice %29 {offsets = [0, 64], sizes = [512, 32], strides = [1, 1]} : vector<512x96xf32> to vector<512x32xf32>
    %c0_18 = arith.constant 0 : index
    %c0_19 = arith.constant 0 : index
    %35 = vector.load %arg8[%c0_18, %c0_19] : memref<512x32xf32, #tpu.memory_space<vmem>>, vector<512x32xf32>
    tpu.vector_store %arg8[%c0_18, %c0_19], %34 {strides = array<i32>} : memref<512x32xf32, #tpu.memory_space<vmem>>, vector<512x32xf32>,
    return
  }
  func.func @transform_0(%arg0: i32) -> (i32, i32) {
    %c0_i32 = arith.constant 0 : i32
    %c0_i32_0 = arith.constant 0 : i32
    return %arg0, %c0_i32 : i32, i32
  }
  func.func @transform_1(%arg0: i32) -> (i32, i32) {
    %c0_i32 = arith.constant 0 : i32
    %c0_i32_0 = arith.constant 0 : i32
    %c0_i32_1 = arith.constant 0 : i32
    return %c0_i32, %c0_i32_0 : i32, i32
  }
  func.func @transform_2(%arg0: i32) -> (i32, i32) {
    %c0_i32 = arith.constant 0 : i32
    %c0_i32_0 = arith.constant 0 : i32
    %c0_i32_1 = arith.constant 0 : i32
    return %c0_i32, %c0_i32_0 : i32, i32
  }
  func.func @transform_3(%arg0: i32) -> (i32, i32) {
    %c0_i32 = arith.constant 0 : i32
    %c0_i32_0 = arith.constant 0 : i32
    %c0_i32_1 = arith.constant 0 : i32
    return %c0_i32, %c0_i32_0 : i32, i32
  }
  func.func @transform_4(%arg0: i32) -> (i32, i32) {
    %c0_i32 = arith.constant 0 : i32
    %c0_i32_0 = arith.constant 0 : i32
    %c0_i32_1 = arith.constant 0 : i32
    return %c0_i32, %c0_i32_0 : i32, i32
  }
  func.func @transform_5(%arg0: i32) -> (i32, i32) {
    %c0_i32 = arith.constant 0 : i32
    %c0_i32_0 = arith.constant 0 : i32
    return %arg0, %c0_i32 : i32, i32
  }
  func.func @transform_6(%arg0: i32) -> (i32, i32) {
    %c0_i32 = arith.constant 0 : i32
    %c0_i32_0 = arith.constant 0 : i32
    return %arg0, %c0_i32 : i32, i32
  }
  func.func @transform_7(%arg0: i32) -> (i32, i32) {
    %c0_i32 = arith.constant 0 : i32
    %c0_i32_0 = arith.constant 0 : i32
    return %arg0, %c0_i32 : i32, i32
  }
}

</mosaic_0001>

<llo_original>
// kernel: tpu_custom_call.1
$region0: #{tpu_custom_call.1}
  #allocation0 [shape = 'u32[]', space=smem, size = 0x4, offset = 0x4, fixed_abs, tag = 'smem constant byte address 0x4 - core index']
  #allocation1 [shape = 'u32[72,128]{1,0:T(1,128)}', space=vmem, size = 0x9000, scoped, tag = 'internal scratch']
  %s0 = inlined_call_operand.vmem [shape: f32[512,32], index: 0, kind: input, shape index: {}]
  %s1 = inlined_call_operand.vmem [shape: f32[1,32], index: 1, kind: input, shape index: {}]
  %s2 = inlined_call_operand.vmem [shape: f32[1,32], index: 2, kind: input, shape index: {}]
  %s3 = inlined_call_operand.vmem [shape: f32[32,96], index: 3, kind: input, shape index: {}]
  %s4 = inlined_call_operand.vmem [shape: f32[1,96], index: 4, kind: input, shape index: {}]
  %s5 = inlined_call_operand.vmem [shape: f32[512,32], index: 5, kind: output, shape index: {0}]
  %s6 = inlined_call_operand.vmem [shape: f32[512,32], index: 6, kind: output, shape index: {1}]
  %s7 = inlined_call_operand.vmem [shape: f32[512,32], index: 7, kind: output, shape index: {2}]
  %8 = xla_tuple %s5, %s6, %s7
  %s9 = sld [smem:[#allocation0]]
  $region46: #{tpu_custom_call.1} parent=0
    _
  %s11 = ssub.s32 1, %s9
  %s12 = scalar_select 0, %s11, %s9
  // Predicated region
  $region2: #{tpu_custom_call.1} parent=0 // pred_check
    _
  $region3: #{tpu_custom_call.1} parent=0 // pred_check_branch
    %14 = sbr.rel (0) target = $region5
  $region4: #{tpu_custom_call.1} parent=0 // pred_region
    _
  $region5: #{tpu_custom_call.1} parent=0 // pred_fallthru
    _
  // Predicated region
  $region6: #{tpu_custom_call.1} parent=0 // pred_check
    _
  $region7: #{tpu_custom_call.1} parent=0 // pred_check_branch
    %16 = sbr.rel (0) target = $region9
  $region8: #{tpu_custom_call.1} parent=0 // pred_region
    _
  $region9: #{tpu_custom_call.1} parent=0 // pred_fallthru
    _
  // Predicated region
  $region10: #{tpu_custom_call.1} parent=0 // pred_check
    _
  $region11: #{tpu_custom_call.1} parent=0 // pred_check_branch
    %18 = sbr.rel (0) target = $region13
  $region12: #{tpu_custom_call.1} parent=0 // pred_region
    _
  $region13: #{tpu_custom_call.1} parent=0 // pred_fallthru
    _
  // Predicated region
  $region14: #{tpu_custom_call.1} parent=0 // pred_check
    _
  $region15: #{tpu_custom_call.1} parent=0 // pred_check_branch
    %20 = sbr.rel (0) target = $region17
  $region16: #{tpu_custom_call.1} parent=0 // pred_region
    _
  $region17: #{tpu_custom_call.1} parent=0 // pred_fallthru
    _
  // Predicated region
  $region18: #{tpu_custom_call.1} parent=0 // pred_check
    _
  $region19: #{tpu_custom_call.1} parent=0 // pred_check_branch
    %22 = sbr.rel (0) target = $region21
  $region20: #{tpu_custom_call.1} parent=0 // pred_region
    _
  $region21: #{tpu_custom_call.1} parent=0 // pred_fallthru
    _
  %v23 = vld [vmem:[%s0] sm:$0xff]
  %v24 = vld [vmem:[%s0 + $0x8] sm:$0xff]
  %v25 = vld [vmem:[%s0 + $0x10] sm:$0xff]
  %v26 = vld [vmem:[%s0 + $0x18] sm:$0xff]
  %v27 = vld [vmem:[%s0 + $0x20] sm:$0xff]
  %v28 = vld [vmem:[%s0 + $0x28] sm:$0xff]
  %v29 = vld [vmem:[%s0 + $0x30] sm:$0xff]
  %v30 = vld [vmem:[%s0 + $0x38] sm:$0xff]
  %v31 = vld [vmem:[%s0 + $0x40] sm:$0xff]
  %v32 = vld [vmem:[%s0 + $0x48] sm:$0xff]
  %v33 = vld [vmem:[%s0 + $0x50] sm:$0xff]
  %v34 = vld [vmem:[%s0 + $0x58] sm:$0xff]
  %v35 = vld [vmem:[%s0 + $0x60] sm:$0xff]
  %v36 = vld [vmem:[%s0 + $0x68] sm:$0xff]
  %v37 = vld [vmem:[%s0 + $0x70] sm:$0xff]
  %v38 = vld [vmem:[%s0 + $0x78] sm:$0xff]
  %v39 = vld [vmem:[%s0 + $0x80] sm:$0xff]
  %v40 = vld [vmem:[%s0 + $0x88] sm:$0xff]
  %v41 = vld [vmem:[%s0 + $0x90] sm:$0xff]
  %v42 = vld [vmem:[%s0 + $0x98] sm:$0xff]
  %v43 = vld [vmem:[%s0 + $0xa0] sm:$0xff]
  %v44 = vld [vmem:[%s0 + $0xa8] sm:$0xff]
  %v45 = vld [vmem:[%s0 + $0xb0] sm:$0xff]
  %v46 = vld [vmem:[%s0 + $0xb8] sm:$0xff]
  %v47 = vld [vmem:[%s0 + $0xc0] sm:$0xff]
  %v48 = vld [vmem:[%s0 + $0xc8] sm:$0xff]
  %v49 = vld [vmem:[%s0 + $0xd0] sm:$0xff]
  %v50 = vld [vmem:[%s0 + $0xd8] sm:$0xff]
  %v51 = vld [vmem:[%s0 + $0xe0] sm:$0xff]
  %v52 = vld [vmem:[%s0 + $0xe8] sm:$0xff]
  %v53 = vld [vmem:[%s0 + $0xf0] sm:$0xff]
  %v54 = vld [vmem:[%s0 + $0xf8] sm:$0xff]
  %v55 = vld [vmem:[%s0 + $0x100] sm:$0xff]
  %v56 = vld [vmem:[%s0 + $0x108] sm:$0xff]
  %v57 = vld [vmem:[%s0 + $0x110] sm:$0xff]
  %v58 = vld [vmem:[%s0 + $0x118] sm:$0xff]
  %v59 = vld [vmem:[%s0 + $0x120] sm:$0xff]
  %v60 = vld [vmem:[%s0 + $0x128] sm:$0xff]
  %v61 = vld [vmem:[%s0 + $0x130] sm:$0xff]
  %v62 = vld [vmem:[%s0 + $0x138] sm:$0xff]
  %v63 = vld [vmem:[%s0 + $0x140] sm:$0xff]
  %v64 = vld [vmem:[%s0 + $0x148] sm:$0xff]
  %v65 = vld [vmem:[%s0 + $0x150] sm:$0xff]
  %v66 = vld [vmem:[%s0 + $0x158] sm:$0xff]
  %v67 = vld [vmem:[%s0 + $0x160] sm:$0xff]
  %v68 = vld [vmem:[%s0 + $0x168] sm:$0xff]
  %v69 = vld [vmem:[%s0 + $0x170] sm:$0xff]
  %v70 = vld [vmem:[%s0 + $0x178] sm:$0xff]
  %v71 = vld [vmem:[%s0 + $0x180] sm:$0xff]
  %v72 = vld [vmem:[%s0 + $0x188] sm:$0xff]
  %v73 = vld [vmem:[%s0 + $0x190] sm:$0xff]
  %v74 = vld [vmem:[%s0 + $0x198] sm:$0xff]
  %v75 = vld [vmem:[%s0 + $0x1a0] sm:$0xff]
  %v76 = vld [vmem:[%s0 + $0x1a8] sm:$0xff]
  %v77 = vld [vmem:[%s0 + $0x1b0] sm:$0xff]
  %v78 = vld [vmem:[%s0 + $0x1b8] sm:$0xff]
  %v79 = vld [vmem:[%s0 + $0x1c0] sm:$0xff]
  %v80 = vld [vmem:[%s0 + $0x1c8] sm:$0xff]
  %v81 = vld [vmem:[%s0 + $0x1d0] sm:$0xff]
  %v82 = vld [vmem:[%s0 + $0x1d8] sm:$0xff]
  %v83 = vld [vmem:[%s0 + $0x1e0] sm:$0xff]
  %v84 = vld [vmem:[%s0 + $0x1e8] sm:$0xff]
  %v85 = vld [vmem:[%s0 + $0x1f0] sm:$0xff]
  %v86 = vld [vmem:[%s0 + $0x1f8] sm:$0xff]
  %v87 = vld [vmem:[%s1] sm:$0x1]
  %v88 = vld [vmem:[%s2] sm:$0x1]
  %vm89 = vcmask 261120
  %v90 = vsel %vm89, %v23, 0.0
  %91 = vadd.xlane.f32.xlu0 %v90
  %v92 = vpop.xlane.xlu0 %91
  %v93 = vsel %vm89, %v24, 0.0
  %94 = vadd.xlane.f32.xlu0 %v93
  %v95 = vpop.xlane.xlu0 %94
  %v96 = vsel %vm89, %v25, 0.0
  %97 = vadd.xlane.f32.xlu0 %v96
  %v98 = vpop.xlane.xlu0 %97
  %v99 = vsel %vm89, %v26, 0.0
  %100 = vadd.xlane.f32.xlu0 %v99
  %v101 = vpop.xlane.xlu0 %100
  %v102 = vsel %vm89, %v27, 0.0
  %103 = vadd.xlane.f32.xlu0 %v102
  %v104 = vpop.xlane.xlu0 %103
  %v105 = vsel %vm89, %v28, 0.0
  %106 = vadd.xlane.f32.xlu0 %v105
  %v107 = vpop.xlane.xlu0 %106
  %v108 = vsel %vm89, %v29, 0.0
  %109 = vadd.xlane.f32.xlu0 %v108
  %v110 = vpop.xlane.xlu0 %109
  %v111 = vsel %vm89, %v30, 0.0
  %112 = vadd.xlane.f32.xlu0 %v111
  %v113 = vpop.xlane.xlu0 %112
  %v114 = vsel %vm89, %v31, 0.0
  %115 = vadd.xlane.f32.xlu0 %v114
  %v116 = vpop.xlane.xlu0 %115
  %v117 = vsel %vm89, %v32, 0.0
  %118 = vadd.xlane.f32.xlu0 %v117
  %v119 = vpop.xlane.xlu0 %118
  %v120 = vsel %vm89, %v33, 0.0
  %121 = vadd.xlane.f32.xlu0 %v120
  %v122 = vpop.xlane.xlu0 %121
  %v123 = vsel %vm89, %v34, 0.0
  %124 = vadd.xlane.f32.xlu0 %v123
  %v125 = vpop.xlane.xlu0 %124
  %v126 = vsel %vm89, %v35, 0.0
  %127 = vadd.xlane.f32.xlu0 %v126
  %v128 = vpop.xlane.xlu0 %127
  %v129 = vsel %vm89, %v36, 0.0
  %130 = vadd.xlane.f32.xlu0 %v129
  %v131 = vpop.xlane.xlu0 %130
  %v132 = vsel %vm89, %v37, 0.0
  %133 = vadd.xlane.f32.xlu0 %v132
  %v134 = vpop.xlane.xlu0 %133
  %v135 = vsel %vm89, %v38, 0.0
  %136 = vadd.xlane.f32.xlu0 %v135
  %v137 = vpop.xlane.xlu0 %136
  %v138 = vsel %vm89, %v39, 0.0
  %139 = vadd.xlane.f32.xlu0 %v138
  %v140 = vpop.xlane.xlu0 %139
  %v141 = vsel %vm89, %v40, 0.0
  %142 = vadd.xlane.f32.xlu0 %v141
  %v143 = vpop.xlane.xlu0 %142
  %v144 = vsel %vm89, %v41, 0.0
  %145 = vadd.xlane.f32.xlu0 %v144
  %v146 = vpop.xlane.xlu0 %145
  %v147 = vsel %vm89, %v42, 0.0
  %148 = vadd.xlane.f32.xlu0 %v147
  %v149 = vpop.xlane.xlu0 %148
  %v150 = vsel %vm89, %v43, 0.0
  %151 = vadd.xlane.f32.xlu0 %v150
  %v152 = vpop.xlane.xlu0 %151
  %v153 = vsel %vm89, %v44, 0.0
  %154 = vadd.xlane.f32.xlu0 %v153
  %v155 = vpop.xlane.xlu0 %154
  %v156 = vsel %vm89, %v45, 0.0
  %157 = vadd.xlane.f32.xlu0 %v156
  %v158 = vpop.xlane.xlu0 %157
  %v159 = vsel %vm89, %v46, 0.0
  %160 = vadd.xlane.f32.xlu0 %v159
  %v161 = vpop.xlane.xlu0 %160
  %v162 = vsel %vm89, %v47, 0.0
  %163 = vadd.xlane.f32.xlu0 %v162
  %v164 = vpop.xlane.xlu0 %163
  %v165 = vsel %vm89, %v48, 0.0
  %166 = vadd.xlane.f32.xlu0 %v165
  %v167 = vpop.xlane.xlu0 %166
  %v168 = vsel %vm89, %v49, 0.0
  %169 = vadd.xlane.f32.xlu0 %v168
  %v170 = vpop.xlane.xlu0 %169
  %v171 = vsel %vm89, %v50, 0.0
  %172 = vadd.xlane.f32.xlu0 %v171
  %v173 = vpop.xlane.xlu0 %172
  %v174 = vsel %vm89, %v51, 0.0
  %175 = vadd.xlane.f32.xlu0 %v174
  %v176 = vpop.xlane.xlu0 %175
  %v177 = vsel %vm89, %v52, 0.0
  %178 = vadd.xlane.f32.xlu0 %v177
  %v179 = vpop.xlane.xlu0 %178
  %v180 = vsel %vm89, %v53, 0.0
  %181 = vadd.xlane.f32.xlu0 %v180
  %v182 = vpop.xlane.xlu0 %181
  %v183 = vsel %vm89, %v54, 0.0
  %184 = vadd.xlane.f32.xlu0 %v183
  %v185 = vpop.xlane.xlu0 %184
  %v186 = vsel %vm89, %v55, 0.0
  %187 = vadd.xlane.f32.xlu0 %v186
  %v188 = vpop.xlane.xlu0 %187
  %v189 = vsel %vm89, %v56, 0.0
  %190 = vadd.xlane.f32.xlu0 %v189
  %v191 = vpop.xlane.xlu0 %190
  %v192 = vsel %vm89, %v57, 0.0
  %193 = vadd.xlane.f32.xlu0 %v192
  %v194 = vpop.xlane.xlu0 %193
  %v195 = vsel %vm89, %v58, 0.0
  %196 = vadd.xlane.f32.xlu0 %v195
  %v197 = vpop.xlane.xlu0 %196
  %v198 = vsel %vm89, %v59, 0.0
  %199 = vadd.xlane.f32.xlu0 %v198
  %v200 = vpop.xlane.xlu0 %199
  %v201 = vsel %vm89, %v60, 0.0
  %202 = vadd.xlane.f32.xlu0 %v201
  %v203 = vpop.xlane.xlu0 %202
  %v204 = vsel %vm89, %v61, 0.0
  %205 = vadd.xlane.f32.xlu0 %v204
  %v206 = vpop.xlane.xlu0 %205
  %v207 = vsel %vm89, %v62, 0.0
  %208 = vadd.xlane.f32.xlu0 %v207
  %v209 = vpop.xlane.xlu0 %208
  %v210 = vsel %vm89, %v63, 0.0
  %211 = vadd.xlane.f32.xlu0 %v210
  %v212 = vpop.xlane.xlu0 %211
  %v213 = vsel %vm89, %v64, 0.0
  %214 = vadd.xlane.f32.xlu0 %v213
  %v215 = vpop.xlane.xlu0 %214
  %v216 = vsel %vm89, %v65, 0.0
  %217 = vadd.xlane.f32.xlu0 %v216
  %v218 = vpop.xlane.xlu0 %217
  %v219 = vsel %vm89, %v66, 0.0
  %220 = vadd.xlane.f32.xlu0 %v219
  %v221 = vpop.xlane.xlu0 %220
  %v222 = vsel %vm89, %v67, 0.0
  %223 = vadd.xlane.f32.xlu0 %v222
  %v224 = vpop.xlane.xlu0 %223
  %v225 = vsel %vm89, %v68, 0.0
  %226 = vadd.xlane.f32.xlu0 %v225
  %v227 = vpop.xlane.xlu0 %226
  %v228 = vsel %vm89, %v69, 0.0
  %229 = vadd.xlane.f32.xlu0 %v228
  %v230 = vpop.xlane.xlu0 %229
  %v231 = vsel %vm89, %v70, 0.0
  %232 = vadd.xlane.f32.xlu0 %v231
  %v233 = vpop.xlane.xlu0 %232
  %v234 = vsel %vm89, %v71, 0.0
  %235 = vadd.xlane.f32.xlu0 %v234
  %v236 = vpop.xlane.xlu0 %235
  %v237 = vsel %vm89, %v72, 0.0
  %238 = vadd.xlane.f32.xlu0 %v237
  %v239 = vpop.xlane.xlu0 %238
  %v240 = vsel %vm89, %v73, 0.0
  %241 = vadd.xlane.f32.xlu0 %v240
  %v242 = vpop.xlane.xlu0 %241
  %v243 = vsel %vm89, %v74, 0.0
  %244 = vadd.xlane.f32.xlu0 %v243
  %v245 = vpop.xlane.xlu0 %244
  %v246 = vsel %vm89, %v75, 0.0
  %247 = vadd.xlane.f32.xlu0 %v246
  %v248 = vpop.xlane.xlu0 %247
  %v249 = vsel %vm89, %v76, 0.0
  %250 = vadd.xlane.f32.xlu0 %v249
  %v251 = vpop.xlane.xlu0 %250
  %v252 = vsel %vm89, %v77, 0.0
  %253 = vadd.xlane.f32.xlu0 %v252
  %v254 = vpop.xlane.xlu0 %253
  %v255 = vsel %vm89, %v78, 0.0
  %256 = vadd.xlane.f32.xlu0 %v255
  %v257 = vpop.xlane.xlu0 %256
  %v258 = vsel %vm89, %v79, 0.0
  %259 = vadd.xlane.f32.xlu0 %v258
  %v260 = vpop.xlane.xlu0 %259
  %v261 = vsel %vm89, %v80, 0.0
  %262 = vadd.xlane.f32.xlu0 %v261
  %v263 = vpop.xlane.xlu0 %262
  %v264 = vsel %vm89, %v81, 0.0
  %265 = vadd.xlane.f32.xlu0 %v264
  %v266 = vpop.xlane.xlu0 %265
  %v267 = vsel %vm89, %v82, 0.0
  %268 = vadd.xlane.f32.xlu0 %v267
  %v269 = vpop.xlane.xlu0 %268
  %v270 = vsel %vm89, %v83, 0.0
  %271 = vadd.xlane.f32.xlu0 %v270
  %v272 = vpop.xlane.xlu0 %271
  %v273 = vsel %vm89, %v84, 0.0
  %274 = vadd.xlane.f32.xlu0 %v273
  %v275 = vpop.xlane.xlu0 %274
  %v276 = vsel %vm89, %v85, 0.0
  %277 = vadd.xlane.f32.xlu0 %v276
  %v278 = vpop.xlane.xlu0 %277
  %v279 = vsel %vm89, %v86, 0.0
  %280 = vadd.xlane.f32.xlu0 %v279
  %v281 = vpop.xlane.xlu0 %280
  %v282 = vrcp.pop 32.0
  %v283 = vmul.f32 32.0, %v282
  %v284 = vsub.f32 1.0, %v283
  %v285 = vmul.f32 %v282, %v284
  %v286 = vadd.f32 %v282, %v285
  %vm287 = vweird.f32 %v282
  %v288 = vsel %vm287, %v282, %v286
  %v289 = vmul.f32 %v92, %v288
  %v290 = vmul.f32 %v95, %v288
  %v291 = vmul.f32 %v98, %v288
  %v292 = vmul.f32 %v101, %v288
  %v293 = vmul.f32 %v104, %v288
  %v294 = vmul.f32 %v107, %v288
  %v295 = vmul.f32 %v110, %v288
  %v296 = vmul.f32 %v113, %v288
  %v297 = vmul.f32 %v116, %v288
  %v298 = vmul.f32 %v119, %v288
  %v299 = vmul.f32 %v122, %v288
  %v300 = vmul.f32 %v125, %v288
  %v301 = vmul.f32 %v128, %v288
  %v302 = vmul.f32 %v131, %v288
  %v303 = vmul.f32 %v134, %v288
  %v304 = vmul.f32 %v137, %v288
  %v305 = vmul.f32 %v140, %v288
  %v306 = vmul.f32 %v143, %v288
  %v307 = vmul.f32 %v146, %v288
  %v308 = vmul.f32 %v149, %v288
  %v309 = vmul.f32 %v152, %v288
  %v310 = vmul.f32 %v155, %v288
  %v311 = vmul.f32 %v158, %v288
  %v312 = vmul.f32 %v161, %v288
  %v313 = vmul.f32 %v164, %v288
  %v314 = vmul.f32 %v167, %v288
  %v315 = vmul.f32 %v170, %v288
  %v316 = vmul.f32 %v173, %v288
  %v317 = vmul.f32 %v176, %v288
  %v318 = vmul.f32 %v179, %v288
  %v319 = vmul.f32 %v182, %v288
  %v320 = vmul.f32 %v185, %v288
  %v321 = vmul.f32 %v188, %v288
  %v322 = vmul.f32 %v191, %v288
  %v323 = vmul.f32 %v194, %v288
  %v324 = vmul.f32 %v197, %v288
  %v325 = vmul.f32 %v200, %v288
  %v326 = vmul.f32 %v203, %v288
  %v327 = vmul.f32 %v206, %v288
  %v328 = vmul.f32 %v209, %v288
  %v329 = vmul.f32 %v212, %v288
  %v330 = vmul.f32 %v215, %v288
  %v331 = vmul.f32 %v218, %v288
  %v332 = vmul.f32 %v221, %v288
  %v333 = vmul.f32 %v224, %v288
  %v334 = vmul.f32 %v227, %v288
  %v335 = vmul.f32 %v230, %v288
  %v336 = vmul.f32 %v233, %v288
  %v337 = vmul.f32 %v236, %v288
  %v338 = vmul.f32 %v239, %v288
  %v339 = vmul.f32 %v242, %v288
  %v340 = vmul.f32 %v245, %v288
  %v341 = vmul.f32 %v248, %v288
  %v342 = vmul.f32 %v251, %v288
  %v343 = vmul.f32 %v254, %v288
  %v344 = vmul.f32 %v257, %v288
  %v345 = vmul.f32 %v260, %v288
  %v346 = vmul.f32 %v263, %v288
  %v347 = vmul.f32 %v266, %v288
  %v348 = vmul.f32 %v269, %v288
  %v349 = vmul.f32 %v272, %v288
  %v350 = vmul.f32 %v275, %v288
  %v351 = vmul.f32 %v278, %v288
  %v352 = vmul.f32 %v281, %v288
  %v353 = vsub.f32 %v23, %v289
  %v354 = vsub.f32 %v24, %v290
  %v355 = vsub.f32 %v25, %v291
  %v356 = vsub.f32 %v26, %v292
  %v357 = vsub.f32 %v27, %v293
  %v358 = vsub.f32 %v28, %v294
  %v359 = vsub.f32 %v29, %v295
  %v360 = vsub.f32 %v30, %v296
  %v361 = vsub.f32 %v31, %v297
  %v362 = vsub.f32 %v32, %v298
  %v363 = vsub.f32 %v33, %v299
  %v364 = vsub.f32 %v34, %v300
  %v365 = vsub.f32 %v35, %v301
  %v366 = vsub.f32 %v36, %v302
  %v367 = vsub.f32 %v37, %v303
  %v368 = vsub.f32 %v38, %v304
  %v369 = vsub.f32 %v39, %v305
  %v370 = vsub.f32 %v40, %v306
  %v371 = vsub.f32 %v41, %v307
  %v372 = vsub.f32 %v42, %v308
  %v373 = vsub.f32 %v43, %v309
  %v374 = vsub.f32 %v44, %v310
  %v375 = vsub.f32 %v45, %v311
  %v376 = vsub.f32 %v46, %v312
  %v377 = vsub.f32 %v47, %v313
  %v378 = vsub.f32 %v48, %v314
  %v379 = vsub.f32 %v49, %v315
  %v380 = vsub.f32 %v50, %v316
  %v381 = vsub.f32 %v51, %v317
  %v382 = vsub.f32 %v52, %v318
  %v383 = vsub.f32 %v53, %v319
  %v384 = vsub.f32 %v54, %v320
  %v385 = vsub.f32 %v55, %v321
  %v386 = vsub.f32 %v56, %v322
  %v387 = vsub.f32 %v57, %v323
  %v388 = vsub.f32 %v58, %v324
  %v389 = vsub.f32 %v59, %v325
  %v390 = vsub.f32 %v60, %v326
  %v391 = vsub.f32 %v61, %v327
  %v392 = vsub.f32 %v62, %v328
  %v393 = vsub.f32 %v63, %v329
  %v394 = vsub.f32 %v64, %v330
  %v395 = vsub.f32 %v65, %v331
  %v396 = vsub.f32 %v66, %v332
  %v397 = vsub.f32 %v67, %v333
  %v398 = vsub.f32 %v68, %v334
  %v399 = vsub.f32 %v69, %v335
  %v400 = vsub.f32 %v70, %v336
  %v401 = vsub.f32 %v71, %v337
  %v402 = vsub.f32 %v72, %v338
  %v403 = vsub.f32 %v73, %v339
  %v404 = vsub.f32 %v74, %v340
  %v405 = vsub.f32 %v75, %v341
  %v406 = vsub.f32 %v76, %v342
  %v407 = vsub.f32 %v77, %v343
  %v408 = vsub.f32 %v78, %v344
  %v409 = vsub.f32 %v79, %v345
  %v410 = vsub.f32 %v80, %v346
  %v411 = vsub.f32 %v81, %v347
  %v412 = vsub.f32 %v82, %v348
  %v413 = vsub.f32 %v83, %v349
  %v414 = vsub.f32 %v84, %v350
  %v415 = vsub.f32 %v85, %v351
  %v416 = vsub.f32 %v86, %v352
  %v417 = vmul.f32 %v353, %v353
  %v418 = vmul.f32 %v354, %v354
  %v419 = vmul.f32 %v355, %v355
  %v420 = vmul.f32 %v356, %v356
  %v421 = vmul.f32 %v357, %v357
  %v422 = vmul.f32 %v358, %v358
  %v423 = vmul.f32 %v359, %v359
  %v424 = vmul.f32 %v360, %v360
  %v425 = vmul.f32 %v361, %v361
  %v426 = vmul.f32 %v362, %v362
  %v427 = vmul.f32 %v363, %v363
  %v428 = vmul.f32 %v364, %v364
  %v429 = vmul.f32 %v365, %v365
  %v430 = vmul.f32 %v366, %v366
  %v431 = vmul.f32 %v367, %v367
  %v432 = vmul.f32 %v368, %v368
  %v433 = vmul.f32 %v369, %v369
  %v434 = vmul.f32 %v370, %v370
  %v435 = vmul.f32 %v371, %v371
  %v436 = vmul.f32 %v372, %v372
  %v437 = vmul.f32 %v373, %v373
  %v438 = vmul.f32 %v374, %v374
  %v439 = vmul.f32 %v375, %v375
  %v440 = vmul.f32 %v376, %v376
  %v441 = vmul.f32 %v377, %v377
  %v442 = vmul.f32 %v378, %v378
  %v443 = vmul.f32 %v379, %v379
  %v444 = vmul.f32 %v380, %v380
  %v445 = vmul.f32 %v381, %v381
  %v446 = vmul.f32 %v382, %v382
  %v447 = vmul.f32 %v383, %v383
  %v448 = vmul.f32 %v384, %v384
  %v449 = vmul.f32 %v385, %v385
  %v450 = vmul.f32 %v386, %v386
  %v451 = vmul.f32 %v387, %v387
  %v452 = vmul.f32 %v388, %v388
  %v453 = vmul.f32 %v389, %v389
  %v454 = vmul.f32 %v390, %v390
  %v455 = vmul.f32 %v391, %v391
  %v456 = vmul.f32 %v392, %v392
  %v457 = vmul.f32 %v393, %v393
  %v458 = vmul.f32 %v394, %v394
  %v459 = vmul.f32 %v395, %v395
  %v460 = vmul.f32 %v396, %v396
  %v461 = vmul.f32 %v397, %v397
  %v462 = vmul.f32 %v398, %v398
  %v463 = vmul.f32 %v399, %v399
  %v464 = vmul.f32 %v400, %v400
  %v465 = vmul.f32 %v401, %v401
  %v466 = vmul.f32 %v402, %v402
  %v467 = vmul.f32 %v403, %v403
  %v468 = vmul.f32 %v404, %v404
  %v469 = vmul.f32 %v405, %v405
  %v470 = vmul.f32 %v406, %v406
  %v471 = vmul.f32 %v407, %v407
  %v472 = vmul.f32 %v408, %v408
  %v473 = vmul.f32 %v409, %v409
  %v474 = vmul.f32 %v410, %v410
  %v475 = vmul.f32 %v411, %v411
  %v476 = vmul.f32 %v412, %v412
  %v477 = vmul.f32 %v413, %v413
  %v478 = vmul.f32 %v414, %v414
  %v479 = vmul.f32 %v415, %v415
  %v480 = vmul.f32 %v416, %v416
  %v481 = vsel %vm89, %v417, 0.0
  %482 = vadd.xlane.f32.xlu0 %v481
  %v483 = vpop.xlane.xlu0 %482
  %v484 = vsel %vm89, %v418, 0.0
  %485 = vadd.xlane.f32.xlu0 %v484
  %v486 = vpop.xlane.xlu0 %485
  %v487 = vsel %vm89, %v419, 0.0
  %488 = vadd.xlane.f32.xlu0 %v487
  %v489 = vpop.xlane.xlu0 %488
  %v490 = vsel %vm89, %v420, 0.0
  %491 = vadd.xlane.f32.xlu0 %v490
  %v492 = vpop.xlane.xlu0 %491
  %v493 = vsel %vm89, %v421, 0.0
  %494 = vadd.xlane.f32.xlu0 %v493
  %v495 = vpop.xlane.xlu0 %494
  %v496 = vsel %vm89, %v422, 0.0
  %497 = vadd.xlane.f32.xlu0 %v496
  %v498 = vpop.xlane.xlu0 %497
  %v499 = vsel %vm89, %v423, 0.0
  %500 = vadd.xlane.f32.xlu0 %v499
  %v501 = vpop.xlane.xlu0 %500
  %v502 = vsel %vm89, %v424, 0.0
  %503 = vadd.xlane.f32.xlu0 %v502
  %v504 = vpop.xlane.xlu0 %503
  %v505 = vsel %vm89, %v425, 0.0
  %506 = vadd.xlane.f32.xlu0 %v505
  %v507 = vpop.xlane.xlu0 %506
  %v508 = vsel %vm89, %v426, 0.0
  %509 = vadd.xlane.f32.xlu0 %v508
  %v510 = vpop.xlane.xlu0 %509
  %v511 = vsel %vm89, %v427, 0.0
  %512 = vadd.xlane.f32.xlu0 %v511
  %v513 = vpop.xlane.xlu0 %512
  %v514 = vsel %vm89, %v428, 0.0
  %515 = vadd.xlane.f32.xlu0 %v514
  %v516 = vpop.xlane.xlu0 %515
  %v517 = vsel %vm89, %v429, 0.0
  %518 = vadd.xlane.f32.xlu0 %v517
  %v519 = vpop.xlane.xlu0 %518
  %v520 = vsel %vm89, %v430, 0.0
  %521 = vadd.xlane.f32.xlu0 %v520
  %v522 = vpop.xlane.xlu0 %521
  %v523 = vsel %vm89, %v431, 0.0
  %524 = vadd.xlane.f32.xlu0 %v523
  %v525 = vpop.xlane.xlu0 %524
  %v526 = vsel %vm89, %v432, 0.0
  %527 = vadd.xlane.f32.xlu0 %v526
  %v528 = vpop.xlane.xlu0 %527
  %v529 = vsel %vm89, %v433, 0.0
  %530 = vadd.xlane.f32.xlu0 %v529
  %v531 = vpop.xlane.xlu0 %530
  %v532 = vsel %vm89, %v434, 0.0
  %533 = vadd.xlane.f32.xlu0 %v532
  %v534 = vpop.xlane.xlu0 %533
  %v535 = vsel %vm89, %v435, 0.0
  %536 = vadd.xlane.f32.xlu0 %v535
  %v537 = vpop.xlane.xlu0 %536
  %v538 = vsel %vm89, %v436, 0.0
  %539 = vadd.xlane.f32.xlu0 %v538
  %v540 = vpop.xlane.xlu0 %539
  %v541 = vsel %vm89, %v437, 0.0
  %542 = vadd.xlane.f32.xlu0 %v541
  %v543 = vpop.xlane.xlu0 %542
  %v544 = vsel %vm89, %v438, 0.0
  %545 = vadd.xlane.f32.xlu0 %v544
  %v546 = vpop.xlane.xlu0 %545
  %v547 = vsel %vm89, %v439, 0.0
  %548 = vadd.xlane.f32.xlu0 %v547
  %v549 = vpop.xlane.xlu0 %548
  %v550 = vsel %vm89, %v440, 0.0
  %551 = vadd.xlane.f32.xlu0 %v550
  %v552 = vpop.xlane.xlu0 %551
  %v553 = vsel %vm89, %v441, 0.0
  %554 = vadd.xlane.f32.xlu0 %v553
  %v555 = vpop.xlane.xlu0 %554
  %v556 = vsel %vm89, %v442, 0.0
  %557 = vadd.xlane.f32.xlu0 %v556
  %v558 = vpop.xlane.xlu0 %557
  %v559 = vsel %vm89, %v443, 0.0
  %560 = vadd.xlane.f32.xlu0 %v559
  %v561 = vpop.xlane.xlu0 %560
  %v562 = vsel %vm89, %v444, 0.0
  %563 = vadd.xlane.f32.xlu0 %v562
  %v564 = vpop.xlane.xlu0 %563
  %v565 = vsel %vm89, %v445, 0.0
  %566 = vadd.xlane.f32.xlu0 %v565
  %v567 = vpop.xlane.xlu0 %566
  %v568 = vsel %vm89, %v446, 0.0
  %569 = vadd.xlane.f32.xlu0 %v568
  %v570 = vpop.xlane.xlu0 %569
  %v571 = vsel %vm89, %v447, 0.0
  %572 = vadd.xlane.f32.xlu0 %v571
  %v573 = vpop.xlane.xlu0 %572
  %v574 = vsel %vm89, %v448, 0.0
  %575 = vadd.xlane.f32.xlu0 %v574
  %v576 = vpop.xlane.xlu0 %575
  %v577 = vsel %vm89, %v449, 0.0
  %578 = vadd.xlane.f32.xlu0 %v577
  %v579 = vpop.xlane.xlu0 %578
  %v580 = vsel %vm89, %v450, 0.0
  %581 = vadd.xlane.f32.xlu0 %v580
  %v582 = vpop.xlane.xlu0 %581
  %v583 = vsel %vm89, %v451, 0.0
  %584 = vadd.xlane.f32.xlu0 %v583
  %v585 = vpop.xlane.xlu0 %584
  %v586 = vsel %vm89, %v452, 0.0
  %587 = vadd.xlane.f32.xlu0 %v586
  %v588 = vpop.xlane.xlu0 %587
  %v589 = vsel %vm89, %v453, 0.0
  %590 = vadd.xlane.f32.xlu0 %v589
  %v591 = vpop.xlane.xlu0 %590
  %v592 = vsel %vm89, %v454, 0.0
  %593 = vadd.xlane.f32.xlu0 %v592
  %v594 = vpop.xlane.xlu0 %593
  %v595 = vsel %vm89, %v455, 0.0
  %596 = vadd.xlane.f32.xlu0 %v595
  %v597 = vpop.xlane.xlu0 %596
  %v598 = vsel %vm89, %v456, 0.0
  %599 = vadd.xlane.f32.xlu0 %v598
  %v600 = vpop.xlane.xlu0 %599
  %v601 = vsel %vm89, %v457, 0.0
  %602 = vadd.xlane.f32.xlu0 %v601
  %v603 = vpop.xlane.xlu0 %602
  %v604 = vsel %vm89, %v458, 0.0
  %605 = vadd.xlane.f32.xlu0 %v604
  %v606 = vpop.xlane.xlu0 %605
  %v607 = vsel %vm89, %v459, 0.0
  %608 = vadd.xlane.f32.xlu0 %v607
  %v609 = vpop.xlane.xlu0 %608
  %v610 = vsel %vm89, %v460, 0.0
  %611 = vadd.xlane.f32.xlu0 %v610
  %v612 = vpop.xlane.xlu0 %611
  %v613 = vsel %vm89, %v461, 0.0
  %614 = vadd.xlane.f32.xlu0 %v613
  %v615 = vpop.xlane.xlu0 %614
  %v616 = vsel %vm89, %v462, 0.0
  %617 = vadd.xlane.f32.xlu0 %v616
  %v618 = vpop.xlane.xlu0 %617
  %v619 = vsel %vm89, %v463, 0.0
  %620 = vadd.xlane.f32.xlu0 %v619
  %v621 = vpop.xlane.xlu0 %620
  %v622 = vsel %vm89, %v464, 0.0
  %623 = vadd.xlane.f32.xlu0 %v622
  %v624 = vpop.xlane.xlu0 %623
  %v625 = vsel %vm89, %v465, 0.0
  %626 = vadd.xlane.f32.xlu0 %v625
  %v627 = vpop.xlane.xlu0 %626
  %v628 = vsel %vm89, %v466, 0.0
  %629 = vadd.xlane.f32.xlu0 %v628
  %v630 = vpop.xlane.xlu0 %629
  %v631 = vsel %vm89, %v467, 0.0
  %632 = vadd.xlane.f32.xlu0 %v631
  %v633 = vpop.xlane.xlu0 %632
  %v634 = vsel %vm89, %v468, 0.0
  %635 = vadd.xlane.f32.xlu0 %v634
  %v636 = vpop.xlane.xlu0 %635
  %v637 = vsel %vm89, %v469, 0.0
  %638 = vadd.xlane.f32.xlu0 %v637
  %v639 = vpop.xlane.xlu0 %638
  %v640 = vsel %vm89, %v470, 0.0
  %641 = vadd.xlane.f32.xlu0 %v640
  %v642 = vpop.xlane.xlu0 %641
  %v643 = vsel %vm89, %v471, 0.0
  %644 = vadd.xlane.f32.xlu0 %v643
  %v645 = vpop.xlane.xlu0 %644
  %v646 = vsel %vm89, %v472, 0.0
  %647 = vadd.xlane.f32.xlu0 %v646
  %v648 = vpop.xlane.xlu0 %647
  %v649 = vsel %vm89, %v473, 0.0
  %650 = vadd.xlane.f32.xlu0 %v649
  %v651 = vpop.xlane.xlu0 %650
  %v652 = vsel %vm89, %v474, 0.0
  %653 = vadd.xlane.f32.xlu0 %v652
  %v654 = vpop.xlane.xlu0 %653
  %v655 = vsel %vm89, %v475, 0.0
  %656 = vadd.xlane.f32.xlu0 %v655
  %v657 = vpop.xlane.xlu0 %656
  %v658 = vsel %vm89, %v476, 0.0
  %659 = vadd.xlane.f32.xlu0 %v658
  %v660 = vpop.xlane.xlu0 %659
  %v661 = vsel %vm89, %v477, 0.0
  %662 = vadd.xlane.f32.xlu0 %v661
  %v663 = vpop.xlane.xlu0 %662
  %v664 = vsel %vm89, %v478, 0.0
  %665 = vadd.xlane.f32.xlu0 %v664
  %v666 = vpop.xlane.xlu0 %665
  %v667 = vsel %vm89, %v479, 0.0
  %668 = vadd.xlane.f32.xlu0 %v667
  %v669 = vpop.xlane.xlu0 %668
  %v670 = vsel %vm89, %v480, 0.0
  %671 = vadd.xlane.f32.xlu0 %v670
  %v672 = vpop.xlane.xlu0 %671
  %v673 = vmul.f32 %v483, %v288
  %v674 = vmul.f32 %v486, %v288
  %v675 = vmul.f32 %v489, %v288
  %v676 = vmul.f32 %v492, %v288
  %v677 = vmul.f32 %v495, %v288
  %v678 = vmul.f32 %v498, %v288
  %v679 = vmul.f32 %v501, %v288
  %v680 = vmul.f32 %v504, %v288
  %v681 = vmul.f32 %v507, %v288
  %v682 = vmul.f32 %v510, %v288
  %v683 = vmul.f32 %v513, %v288
  %v684 = vmul.f32 %v516, %v288
  %v685 = vmul.f32 %v519, %v288
  %v686 = vmul.f32 %v522, %v288
  %v687 = vmul.f32 %v525, %v288
  %v688 = vmul.f32 %v528, %v288
  %v689 = vmul.f32 %v531, %v288
  %v690 = vmul.f32 %v534, %v288
  %v691 = vmul.f32 %v537, %v288
  %v692 = vmul.f32 %v540, %v288
  %v693 = vmul.f32 %v543, %v288
  %v694 = vmul.f32 %v546, %v288
  %v695 = vmul.f32 %v549, %v288
  %v696 = vmul.f32 %v552, %v288
  %v697 = vmul.f32 %v555, %v288
  %v698 = vmul.f32 %v558, %v288
  %v699 = vmul.f32 %v561, %v288
  %v700 = vmul.f32 %v564, %v288
  %v701 = vmul.f32 %v567, %v288
  %v702 = vmul.f32 %v570, %v288
  %v703 = vmul.f32 %v573, %v288
  %v704 = vmul.f32 %v576, %v288
  %v705 = vmul.f32 %v579, %v288
  %v706 = vmul.f32 %v582, %v288
  %v707 = vmul.f32 %v585, %v288
  %v708 = vmul.f32 %v588, %v288
  %v709 = vmul.f32 %v591, %v288
  %v710 = vmul.f32 %v594, %v288
  %v711 = vmul.f32 %v597, %v288
  %v712 = vmul.f32 %v600, %v288
  %v713 = vmul.f32 %v603, %v288
  %v714 = vmul.f32 %v606, %v288
  %v715 = vmul.f32 %v609, %v288
  %v716 = vmul.f32 %v612, %v288
  %v717 = vmul.f32 %v615, %v288
  %v718 = vmul.f32 %v618, %v288
  %v719 = vmul.f32 %v621, %v288
  %v720 = vmul.f32 %v624, %v288
  %v721 = vmul.f32 %v627, %v288
  %v722 = vmul.f32 %v630, %v288
  %v723 = vmul.f32 %v633, %v288
  %v724 = vmul.f32 %v636, %v288
  %v725 = vmul.f32 %v639, %v288
  %v726 = vmul.f32 %v642, %v288
  %v727 = vmul.f32 %v645, %v288
  %v728 = vmul.f32 %v648, %v288
  %v729 = vmul.f32 %v651, %v288
  %v730 = vmul.f32 %v654, %v288
  %v731 = vmul.f32 %v657, %v288
  %v732 = vmul.f32 %v660, %v288
  %v733 = vmul.f32 %v663, %v288
  %v734 = vmul.f32 %v666, %v288
  %v735 = vmul.f32 %v669, %v288
  %v736 = vmul.f32 %v672, %v288
  %v737 = vadd.f32 %v673, 1e-05
  %v738 = vadd.f32 %v674, 1e-05
  %v739 = vadd.f32 %v675, 1e-05
  %v740 = vadd.f32 %v676, 1e-05
  %v741 = vadd.f32 %v677, 1e-05
  %v742 = vadd.f32 %v678, 1e-05
  %v743 = vadd.f32 %v679, 1e-05
  %v744 = vadd.f32 %v680, 1e-05
  %v745 = vadd.f32 %v681, 1e-05
  %v746 = vadd.f32 %v682, 1e-05
  %v747 = vadd.f32 %v683, 1e-05
  %v748 = vadd.f32 %v684, 1e-05
  %v749 = vadd.f32 %v685, 1e-05
  %v750 = vadd.f32 %v686, 1e-05
  %v751 = vadd.f32 %v687, 1e-05
  %v752 = vadd.f32 %v688, 1e-05
  %v753 = vadd.f32 %v689, 1e-05
  %v754 = vadd.f32 %v690, 1e-05
  %v755 = vadd.f32 %v691, 1e-05
  %v756 = vadd.f32 %v692, 1e-05
  %v757 = vadd.f32 %v693, 1e-05
  %v758 = vadd.f32 %v694, 1e-05
  %v759 = vadd.f32 %v695, 1e-05
  %v760 = vadd.f32 %v696, 1e-05
  %v761 = vadd.f32 %v697, 1e-05
  %v762 = vadd.f32 %v698, 1e-05
  %v763 = vadd.f32 %v699, 1e-05
  %v764 = vadd.f32 %v700, 1e-05
  %v765 = vadd.f32 %v701, 1e-05
  %v766 = vadd.f32 %v702, 1e-05
  %v767 = vadd.f32 %v703, 1e-05
  %v768 = vadd.f32 %v704, 1e-05
  %v769 = vadd.f32 %v705, 1e-05
  %v770 = vadd.f32 %v706, 1e-05
  %v771 = vadd.f32 %v707, 1e-05
  %v772 = vadd.f32 %v708, 1e-05
  %v773 = vadd.f32 %v709, 1e-05
  %v774 = vadd.f32 %v710, 1e-05
  %v775 = vadd.f32 %v711, 1e-05
  %v776 = vadd.f32 %v712, 1e-05
  %v777 = vadd.f32 %v713, 1e-05
  %v778 = vadd.f32 %v714, 1e-05
  %v779 = vadd.f32 %v715, 1e-05
  %v780 = vadd.f32 %v716, 1e-05
  %v781 = vadd.f32 %v717, 1e-05
  %v782 = vadd.f32 %v718, 1e-05
  %v783 = vadd.f32 %v719, 1e-05
  %v784 = vadd.f32 %v720, 1e-05
  %v785 = vadd.f32 %v721, 1e-05
  %v786 = vadd.f32 %v722, 1e-05
  %v787 = vadd.f32 %v723, 1e-05
  %v788 = vadd.f32 %v724, 1e-05
  %v789 = vadd.f32 %v725, 1e-05
  %v790 = vadd.f32 %v726, 1e-05
  %v791 = vadd.f32 %v727, 1e-05
  %v792 = vadd.f32 %v728, 1e-05
  %v793 = vadd.f32 %v729, 1e-05
  %v794 = vadd.f32 %v730, 1e-05
  %v795 = vadd.f32 %v731, 1e-05
  %v796 = vadd.f32 %v732, 1e-05
  %v797 = vadd.f32 %v733, 1e-05
  %v798 = vadd.f32 %v734, 1e-05
  %v799 = vadd.f32 %v735, 1e-05
  %v800 = vadd.f32 %v736, 1e-05
  %v801 = vrsqrt.pop %v737
  %v802 = vmul.f32 %v801, %v737
  %v803 = vmul.f32 %v802, %v801
  %v804 = vmul.f32 0.5, %v803
  %v805 = vsub.f32 1.5, %v804
  %v806 = vmul.f32 %v801, %v805
  %vm807 = vweird.f32 %v737
  %vm808 = vweird.f32 %v801
  %vm809 = vmor %vm807, %vm808
  %v810 = vsel %vm809, %v801, %v806
  %v811 = vrsqrt.pop %v738
  %v812 = vmul.f32 %v811, %v738
  %v813 = vmul.f32 %v812, %v811
  %v814 = vmul.f32 0.5, %v813
  %v815 = vsub.f32 1.5, %v814
  %v816 = vmul.f32 %v811, %v815
  %vm817 = vweird.f32 %v738
  %vm818 = vweird.f32 %v811
  %vm819 = vmor %vm817, %vm818
  %v820 = vsel %vm819, %v811, %v816
  %v821 = vrsqrt.pop %v739
  %v822 = vmul.f32 %v821, %v739
  %v823 = vmul.f32 %v822, %v821
  %v824 = vmul.f32 0.5, %v823
  %v825 = vsub.f32 1.5, %v824
  %v826 = vmul.f32 %v821, %v825
  %vm827 = vweird.f32 %v739
  %vm828 = vweird.f32 %v821
  %vm829 = vmor %vm827, %vm828
  %v830 = vsel %vm829, %v821, %v826
  %v831 = vrsqrt.pop %v740
  %v832 = vmul.f32 %v831, %v740
  %v833 = vmul.f32 %v832, %v831
  %v834 = vmul.f32 0.5, %v833
  %v835 = vsub.f32 1.5, %v834
  %v836 = vmul.f32 %v831, %v835
  %vm837 = vweird.f32 %v740
  %vm838 = vweird.f32 %v831
  %vm839 = vmor %vm837, %vm838
  %v840 = vsel %vm839, %v831, %v836
  %v841 = vrsqrt.pop %v741
  %v842 = vmul.f32 %v841, %v741
  %v843 = vmul.f32 %v842, %v841
  %v844 = vmul.f32 0.5, %v843
  %v845 = vsub.f32 1.5, %v844
  %v846 = vmul.f32 %v841, %v845
  %vm847 = vweird.f32 %v741
  %vm848 = vweird.f32 %v841
  %vm849 = vmor %vm847, %vm848
  %v850 = vsel %vm849, %v841, %v846
  %v851 = vrsqrt.pop %v742
  %v852 = vmul.f32 %v851, %v742
  %v853 = vmul.f32 %v852, %v851
  %v854 = vmul.f32 0.5, %v853
  %v855 = vsub.f32 1.5, %v854
  %v856 = vmul.f32 %v851, %v855
  %vm857 = vweird.f32 %v742
  %vm858 = vweird.f32 %v851
  %vm859 = vmor %vm857, %vm858
  %v860 = vsel %vm859, %v851, %v856
  %v861 = vrsqrt.pop %v743
  %v862 = vmul.f32 %v861, %v743
  %v863 = vmul.f32 %v862, %v861
  %v864 = vmul.f32 0.5, %v863
  %v865 = vsub.f32 1.5, %v864
  %v866 = vmul.f32 %v861, %v865
  %vm867 = vweird.f32 %v743
  %vm868 = vweird.f32 %v861
  %vm869 = vmor %vm867, %vm868
  %v870 = vsel %vm869, %v861, %v866
  %v871 = vrsqrt.pop %v744
  %v872 = vmul.f32 %v871, %v744
  %v873 = vmul.f32 %v872, %v871
  %v874 = vmul.f32 0.5, %v873
  %v875 = vsub.f32 1.5, %v874
  %v876 = vmul.f32 %v871, %v875
  %vm877 = vweird.f32 %v744
  %vm878 = vweird.f32 %v871
  %vm879 = vmor %vm877, %vm878
  %v880 = vsel %vm879, %v871, %v876
  %v881 = vrsqrt.pop %v745
  %v882 = vmul.f32 %v881, %v745
  %v883 = vmul.f32 %v882, %v881
  %v884 = vmul.f32 0.5, %v883
  %v885 = vsub.f32 1.5, %v884
  %v886 = vmul.f32 %v881, %v885
  %vm887 = vweird.f32 %v745
  %vm888 = vweird.f32 %v881
  %vm889 = vmor %vm887, %vm888
  %v890 = vsel %vm889, %v881, %v886
  %v891 = vrsqrt.pop %v746
  %v892 = vmul.f32 %v891, %v746
  %v893 = vmul.f32 %v892, %v891
  %v894 = vmul.f32 0.5, %v893
  %v895 = vsub.f32 1.5, %v894
  %v896 = vmul.f32 %v891, %v895
  %vm897 = vweird.f32 %v746
  %vm898 = vweird.f32 %v891
  %vm899 = vmor %vm897, %vm898
  %v900 = vsel %vm899, %v891, %v896
  %v901 = vrsqrt.pop %v747
  %v902 = vmul.f32 %v901, %v747
  %v903 = vmul.f32 %v902, %v901
  %v904 = vmul.f32 0.5, %v903
  %v905 = vsub.f32 1.5, %v904
  %v906 = vmul.f32 %v901, %v905
  %vm907 = vweird.f32 %v747
  %vm908 = vweird.f32 %v901
  %vm909 = vmor %vm907, %vm908
  %v910 = vsel %vm909, %v901, %v906
  %v911 = vrsqrt.pop %v748
  %v912 = vmul.f32 %v911, %v748
  %v913 = vmul.f32 %v912, %v911
  %v914 = vmul.f32 0.5, %v913
  %v915 = vsub.f32 1.5, %v914
  %v916 = vmul.f32 %v911, %v915
  %vm917 = vweird.f32 %v748
  %vm918 = vweird.f32 %v911
  %vm919 = vmor %vm917, %vm918
  %v920 = vsel %vm919, %v911, %v916
  %v921 = vrsqrt.pop %v749
  %v922 = vmul.f32 %v921, %v749
  %v923 = vmul.f32 %v922, %v921
  %v924 = vmul.f32 0.5, %v923
  %v925 = vsub.f32 1.5, %v924
  %v926 = vmul.f32 %v921, %v925
  %vm927 = vweird.f32 %v749
  %vm928 = vweird.f32 %v921
  %vm929 = vmor %vm927, %vm928
  %v930 = vsel %vm929, %v921, %v926
  %v931 = vrsqrt.pop %v750
  %v932 = vmul.f32 %v931, %v750
  %v933 = vmul.f32 %v932, %v931
  %v934 = vmul.f32 0.5, %v933
  %v935 = vsub.f32 1.5, %v934
  %v936 = vmul.f32 %v931, %v935
  %vm937 = vweird.f32 %v750
  %vm938 = vweird.f32 %v931
  %vm939 = vmor %vm937, %vm938
  %v940 = vsel %vm939, %v931, %v936
  %v941 = vrsqrt.pop %v751
  %v942 = vmul.f32 %v941, %v751
  %v943 = vmul.f32 %v942, %v941
  %v944 = vmul.f32 0.5, %v943
  %v945 = vsub.f32 1.5, %v944
  %v946 = vmul.f32 %v941, %v945
  %vm947 = vweird.f32 %v751
  %vm948 = vweird.f32 %v941
  %vm949 = vmor %vm947, %vm948
  %v950 = vsel %vm949, %v941, %v946
  %v951 = vrsqrt.pop %v752
  %v952 = vmul.f32 %v951, %v752
  %v953 = vmul.f32 %v952, %v951
  %v954 = vmul.f32 0.5, %v953
  %v955 = vsub.f32 1.5, %v954
  %v956 = vmul.f32 %v951, %v955
  %vm957 = vweird.f32 %v752
  %vm958 = vweird.f32 %v951
  %vm959 = vmor %vm957, %vm958
  %v960 = vsel %vm959, %v951, %v956
  %v961 = vrsqrt.pop %v753
  %v962 = vmul.f32 %v961, %v753
  %v963 = vmul.f32 %v962, %v961
  %v964 = vmul.f32 0.5, %v963
  %v965 = vsub.f32 1.5, %v964
  %v966 = vmul.f32 %v961, %v965
  %vm967 = vweird.f32 %v753
  %vm968 = vweird.f32 %v961
  %vm969 = vmor %vm967, %vm968
  %v970 = vsel %vm969, %v961, %v966
  %v971 = vrsqrt.pop %v754
  %v972 = vmul.f32 %v971, %v754
  %v973 = vmul.f32 %v972, %v971
  %v974 = vmul.f32 0.5, %v973
  %v975 = vsub.f32 1.5, %v974
  %v976 = vmul.f32 %v971, %v975
  %vm977 = vweird.f32 %v754
  %vm978 = vweird.f32 %v971
  %vm979 = vmor %vm977, %vm978
  %v980 = vsel %vm979, %v971, %v976
  %v981 = vrsqrt.pop %v755
  %v982 = vmul.f32 %v981, %v755
  %v983 = vmul.f32 %v982, %v981
  %v984 = vmul.f32 0.5, %v983
  %v985 = vsub.f32 1.5, %v984
  %v986 = vmul.f32 %v981, %v985
  %vm987 = vweird.f32 %v755
  %vm988 = vweird.f32 %v981
  %vm989 = vmor %vm987, %vm988
  %v990 = vsel %vm989, %v981, %v986
  %v991 = vrsqrt.pop %v756
  %v992 = vmul.f32 %v991, %v756
  %v993 = vmul.f32 %v992, %v991
  %v994 = vmul.f32 0.5, %v993
  %v995 = vsub.f32 1.5, %v994
  %v996 = vmul.f32 %v991, %v995
  %vm997 = vweird.f32 %v756
  %vm998 = vweird.f32 %v991
  %vm999 = vmor %vm997, %vm998
  %v1000 = vsel %vm999, %v991, %v996
  %v1001 = vrsqrt.pop %v757
  %v1002 = vmul.f32 %v1001, %v757
  %v1003 = vmul.f32 %v1002, %v1001
  %v1004 = vmul.f32 0.5, %v1003
  %v1005 = vsub.f32 1.5, %v1004
  %v1006 = vmul.f32 %v1001, %v1005
  %vm1007 = vweird.f32 %v757
  %vm1008 = vweird.f32 %v1001
  %vm1009 = vmor %vm1007, %vm1008
  %v1010 = vsel %vm1009, %v1001, %v1006
  %v1011 = vrsqrt.pop %v758
  %v1012 = vmul.f32 %v1011, %v758
  %v1013 = vmul.f32 %v1012, %v1011
  %v1014 = vmul.f32 0.5, %v1013
  %v1015 = vsub.f32 1.5, %v1014
  %v1016 = vmul.f32 %v1011, %v1015
  %vm1017 = vweird.f32 %v758
  %vm1018 = vweird.f32 %v1011
  %vm1019 = vmor %vm1017, %vm1018
  %v1020 = vsel %vm1019, %v1011, %v1016
  %v1021 = vrsqrt.pop %v759
  %v1022 = vmul.f32 %v1021, %v759
  %v1023 = vmul.f32 %v1022, %v1021
  %v1024 = vmul.f32 0.5, %v1023
  %v1025 = vsub.f32 1.5, %v1024
  %v1026 = vmul.f32 %v1021, %v1025
  %vm1027 = vweird.f32 %v759
  %vm1028 = vweird.f32 %v1021
  %vm1029 = vmor %vm1027, %vm1028
  %v1030 = vsel %vm1029, %v1021, %v1026
  %v1031 = vrsqrt.pop %v760
  %v1032 = vmul.f32 %v1031, %v760
  %v1033 = vmul.f32 %v1032, %v1031
  %v1034 = vmul.f32 0.5, %v1033
  %v1035 = vsub.f32 1.5, %v1034
  %v1036 = vmul.f32 %v1031, %v1035
  %vm1037 = vweird.f32 %v760
  %vm1038 = vweird.f32 %v1031
  %vm1039 = vmor %vm1037, %vm1038
  %v1040 = vsel %vm1039, %v1031, %v1036
  %v1041 = vrsqrt.pop %v761
  %v1042 = vmul.f32 %v1041, %v761
  %v1043 = vmul.f32 %v1042, %v1041
  %v1044 = vmul.f32 0.5, %v1043
  %v1045 = vsub.f32 1.5, %v1044
  %v1046 = vmul.f32 %v1041, %v1045
  %vm1047 = vweird.f32 %v761
  %vm1048 = vweird.f32 %v1041
  %vm1049 = vmor %vm1047, %vm1048
  %v1050 = vsel %vm1049, %v1041, %v1046
  %v1051 = vrsqrt.pop %v762
  %v1052 = vmul.f32 %v1051, %v762
  %v1053 = vmul.f32 %v1052, %v1051
  %v1054 = vmul.f32 0.5, %v1053
  %v1055 = vsub.f32 1.5, %v1054
  %v1056 = vmul.f32 %v1051, %v1055
  %vm1057 = vweird.f32 %v762
  %vm1058 = vweird.f32 %v1051
  %vm1059 = vmor %vm1057, %vm1058
  %v1060 = vsel %vm1059, %v1051, %v1056
  %v1061 = vrsqrt.pop %v763
  %v1062 = vmul.f32 %v1061, %v763
  %v1063 = vmul.f32 %v1062, %v1061
  %v1064 = vmul.f32 0.5, %v1063
  %v1065 = vsub.f32 1.5, %v1064
  %v1066 = vmul.f32 %v1061, %v1065
  %vm1067 = vweird.f32 %v763
  %vm1068 = vweird.f32 %v1061
  %vm1069 = vmor %vm1067, %vm1068
  %v1070 = vsel %vm1069, %v1061, %v1066
  %v1071 = vrsqrt.pop %v764
  %v1072 = vmul.f32 %v1071, %v764
  %v1073 = vmul.f32 %v1072, %v1071
  %v1074 = vmul.f32 0.5, %v1073
  %v1075 = vsub.f32 1.5, %v1074
  %v1076 = vmul.f32 %v1071, %v1075
  %vm1077 = vweird.f32 %v764
  %vm1078 = vweird.f32 %v1071
  %vm1079 = vmor %vm1077, %vm1078
  %v1080 = vsel %vm1079, %v1071, %v1076
  %v1081 = vrsqrt.pop %v765
  %v1082 = vmul.f32 %v1081, %v765
  %v1083 = vmul.f32 %v1082, %v1081
  %v1084 = vmul.f32 0.5, %v1083
  %v1085 = vsub.f32 1.5, %v1084
  %v1086 = vmul.f32 %v1081, %v1085
  %vm1087 = vweird.f32 %v765
  %vm1088 = vweird.f32 %v1081
  %vm1089 = vmor %vm1087, %vm1088
  %v1090 = vsel %vm1089, %v1081, %v1086
  %v1091 = vrsqrt.pop %v766
  %v1092 = vmul.f32 %v1091, %v766
  %v1093 = vmul.f32 %v1092, %v1091
  %v1094 = vmul.f32 0.5, %v1093
  %v1095 = vsub.f32 1.5, %v1094
  %v1096 = vmul.f32 %v1091, %v1095
  %vm1097 = vweird.f32 %v766
  %vm1098 = vweird.f32 %v1091
  %vm1099 = vmor %vm1097, %vm1098
  %v1100 = vsel %vm1099, %v1091, %v1096
  %v1101 = vrsqrt.pop %v767
  %v1102 = vmul.f32 %v1101, %v767
  %v1103 = vmul.f32 %v1102, %v1101
  %v1104 = vmul.f32 0.5, %v1103
  %v1105 = vsub.f32 1.5, %v1104
  %v1106 = vmul.f32 %v1101, %v1105
  %vm1107 = vweird.f32 %v767
  %vm1108 = vweird.f32 %v1101
  %vm1109 = vmor %vm1107, %vm1108
  %v1110 = vsel %vm1109, %v1101, %v1106
  %v1111 = vrsqrt.pop %v768
  %v1112 = vmul.f32 %v1111, %v768
  %v1113 = vmul.f32 %v1112, %v1111
  %v1114 = vmul.f32 0.5, %v1113
  %v1115 = vsub.f32 1.5, %v1114
  %v1116 = vmul.f32 %v1111, %v1115
  %vm1117 = vweird.f32 %v768
  %vm1118 = vweird.f32 %v1111
  %vm1119 = vmor %vm1117, %vm1118
  %v1120 = vsel %vm1119, %v1111, %v1116
  %v1121 = vrsqrt.pop %v769
  %v1122 = vmul.f32 %v1121, %v769
  %v1123 = vmul.f32 %v1122, %v1121
  %v1124 = vmul.f32 0.5, %v1123
  %v1125 = vsub.f32 1.5, %v1124
  %v1126 = vmul.f32 %v1121, %v1125
  %vm1127 = vweird.f32 %v769
  %vm1128 = vweird.f32 %v1121
  %vm1129 = vmor %vm1127, %vm1128
  %v1130 = vsel %vm1129, %v1121, %v1126
  %v1131 = vrsqrt.pop %v770
  %v1132 = vmul.f32 %v1131, %v770
  %v1133 = vmul.f32 %v1132, %v1131
  %v1134 = vmul.f32 0.5, %v1133
  %v1135 = vsub.f32 1.5, %v1134
  %v1136 = vmul.f32 %v1131, %v1135
  %vm1137 = vweird.f32 %v770
  %vm1138 = vweird.f32 %v1131
  %vm1139 = vmor %vm1137, %vm1138
  %v1140 = vsel %vm1139, %v1131, %v1136
  %v1141 = vrsqrt.pop %v771
  %v1142 = vmul.f32 %v1141, %v771
  %v1143 = vmul.f32 %v1142, %v1141
  %v1144 = vmul.f32 0.5, %v1143
  %v1145 = vsub.f32 1.5, %v1144
  %v1146 = vmul.f32 %v1141, %v1145
  %vm1147 = vweird.f32 %v771
  %vm1148 = vweird.f32 %v1141
  %vm1149 = vmor %vm1147, %vm1148
  %v1150 = vsel %vm1149, %v1141, %v1146
  %v1151 = vrsqrt.pop %v772
  %v1152 = vmul.f32 %v1151, %v772
  %v1153 = vmul.f32 %v1152, %v1151
  %v1154 = vmul.f32 0.5, %v1153
  %v1155 = vsub.f32 1.5, %v1154
  %v1156 = vmul.f32 %v1151, %v1155
  %vm1157 = vweird.f32 %v772
  %vm1158 = vweird.f32 %v1151
  %vm1159 = vmor %vm1157, %vm1158
  %v1160 = vsel %vm1159, %v1151, %v1156
  %v1161 = vrsqrt.pop %v773
  %v1162 = vmul.f32 %v1161, %v773
  %v1163 = vmul.f32 %v1162, %v1161
  %v1164 = vmul.f32 0.5, %v1163
  %v1165 = vsub.f32 1.5, %v1164
  %v1166 = vmul.f32 %v1161, %v1165
  %vm1167 = vweird.f32 %v773
  %vm1168 = vweird.f32 %v1161
  %vm1169 = vmor %vm1167, %vm1168
  %v1170 = vsel %vm1169, %v1161, %v1166
  %v1171 = vrsqrt.pop %v774
  %v1172 = vmul.f32 %v1171, %v774
  %v1173 = vmul.f32 %v1172, %v1171
  %v1174 = vmul.f32 0.5, %v1173
  %v1175 = vsub.f32 1.5, %v1174
  %v1176 = vmul.f32 %v1171, %v1175
  %vm1177 = vweird.f32 %v774
  %vm1178 = vweird.f32 %v1171
  %vm1179 = vmor %vm1177, %vm1178
  %v1180 = vsel %vm1179, %v1171, %v1176
  %v1181 = vrsqrt.pop %v775
  %v1182 = vmul.f32 %v1181, %v775
  %v1183 = vmul.f32 %v1182, %v1181
  %v1184 = vmul.f32 0.5, %v1183
  %v1185 = vsub.f32 1.5, %v1184
  %v1186 = vmul.f32 %v1181, %v1185
  %vm1187 = vweird.f32 %v775
  %vm1188 = vweird.f32 %v1181
  %vm1189 = vmor %vm1187, %vm1188
  %v1190 = vsel %vm1189, %v1181, %v1186
  %v1191 = vrsqrt.pop %v776
  %v1192 = vmul.f32 %v1191, %v776
  %v1193 = vmul.f32 %v1192, %v1191
  %v1194 = vmul.f32 0.5, %v1193
  %v1195 = vsub.f32 1.5, %v1194
  %v1196 = vmul.f32 %v1191, %v1195
  %vm1197 = vweird.f32 %v776
  %vm1198 = vweird.f32 %v1191
  %vm1199 = vmor %vm1197, %vm1198
  %v1200 = vsel %vm1199, %v1191, %v1196
  %v1201 = vrsqrt.pop %v777
  %v1202 = vmul.f32 %v1201, %v777
  %v1203 = vmul.f32 %v1202, %v1201
  %v1204 = vmul.f32 0.5, %v1203
  %v1205 = vsub.f32 1.5, %v1204
  %v1206 = vmul.f32 %v1201, %v1205
  %vm1207 = vweird.f32 %v777
  %vm1208 = vweird.f32 %v1201
  %vm1209 = vmor %vm1207, %vm1208
  %v1210 = vsel %vm1209, %v1201, %v1206
  %v1211 = vrsqrt.pop %v778
  %v1212 = vmul.f32 %v1211, %v778
  %v1213 = vmul.f32 %v1212, %v1211
  %v1214 = vmul.f32 0.5, %v1213
  %v1215 = vsub.f32 1.5, %v1214
  %v1216 = vmul.f32 %v1211, %v1215
  %vm1217 = vweird.f32 %v778
  %vm1218 = vweird.f32 %v1211
  %vm1219 = vmor %vm1217, %vm1218
  %v1220 = vsel %vm1219, %v1211, %v1216
  %v1221 = vrsqrt.pop %v779
  %v1222 = vmul.f32 %v1221, %v779
  %v1223 = vmul.f32 %v1222, %v1221
  %v1224 = vmul.f32 0.5, %v1223
  %v1225 = vsub.f32 1.5, %v1224
  %v1226 = vmul.f32 %v1221, %v1225
  %vm1227 = vweird.f32 %v779
  %vm1228 = vweird.f32 %v1221
  %vm1229 = vmor %vm1227, %vm1228
  %v1230 = vsel %vm1229, %v1221, %v1226
  %v1231 = vrsqrt.pop %v780
  %v1232 = vmul.f32 %v1231, %v780
  %v1233 = vmul.f32 %v1232, %v1231
  %v1234 = vmul.f32 0.5, %v1233
  %v1235 = vsub.f32 1.5, %v1234
  %v1236 = vmul.f32 %v1231, %v1235
  %vm1237 = vweird.f32 %v780
  %vm1238 = vweird.f32 %v1231
  %vm1239 = vmor %vm1237, %vm1238
  %v1240 = vsel %vm1239, %v1231, %v1236
  %v1241 = vrsqrt.pop %v781
  %v1242 = vmul.f32 %v1241, %v781
  %v1243 = vmul.f32 %v1242, %v1241
  %v1244 = vmul.f32 0.5, %v1243
  %v1245 = vsub.f32 1.5, %v1244
  %v1246 = vmul.f32 %v1241, %v1245
  %vm1247 = vweird.f32 %v781
  %vm1248 = vweird.f32 %v1241
  %vm1249 = vmor %vm1247, %vm1248
  %v1250 = vsel %vm1249, %v1241, %v1246
  %v1251 = vrsqrt.pop %v782
  %v1252 = vmul.f32 %v1251, %v782
  %v1253 = vmul.f32 %v1252, %v1251
  %v1254 = vmul.f32 0.5, %v1253
  %v1255 = vsub.f32 1.5, %v1254
  %v1256 = vmul.f32 %v1251, %v1255
  %vm1257 = vweird.f32 %v782
  %vm1258 = vweird.f32 %v1251
  %vm1259 = vmor %vm1257, %vm1258
  %v1260 = vsel %vm1259, %v1251, %v1256
  %v1261 = vrsqrt.pop %v783
  %v1262 = vmul.f32 %v1261, %v783
  %v1263 = vmul.f32 %v1262, %v1261
  %v1264 = vmul.f32 0.5, %v1263
  %v1265 = vsub.f32 1.5, %v1264
  %v1266 = vmul.f32 %v1261, %v1265
  %vm1267 = vweird.f32 %v783
  %vm1268 = vweird.f32 %v1261
  %vm1269 = vmor %vm1267, %vm1268
  %v1270 = vsel %vm1269, %v1261, %v1266
  %v1271 = vrsqrt.pop %v784
  %v1272 = vmul.f32 %v1271, %v784
  %v1273 = vmul.f32 %v1272, %v1271
  %v1274 = vmul.f32 0.5, %v1273
  %v1275 = vsub.f32 1.5, %v1274
  %v1276 = vmul.f32 %v1271, %v1275
  %vm1277 = vweird.f32 %v784
  %vm1278 = vweird.f32 %v1271
  %vm1279 = vmor %vm1277, %vm1278
  %v1280 = vsel %vm1279, %v1271, %v1276
  %v1281 = vrsqrt.pop %v785
  %v1282 = vmul.f32 %v1281, %v785
  %v1283 = vmul.f32 %v1282, %v1281
  %v1284 = vmul.f32 0.5, %v1283
  %v1285 = vsub.f32 1.5, %v1284
  %v1286 = vmul.f32 %v1281, %v1285
  %vm1287 = vweird.f32 %v785
  %vm1288 = vweird.f32 %v1281
  %vm1289 = vmor %vm1287, %vm1288
  %v1290 = vsel %vm1289, %v1281, %v1286
  %v1291 = vrsqrt.pop %v786
  %v1292 = vmul.f32 %v1291, %v786
  %v1293 = vmul.f32 %v1292, %v1291
  %v1294 = vmul.f32 0.5, %v1293
  %v1295 = vsub.f32 1.5, %v1294
  %v1296 = vmul.f32 %v1291, %v1295
  %vm1297 = vweird.f32 %v786
  %vm1298 = vweird.f32 %v1291
  %vm1299 = vmor %vm1297, %vm1298
  %v1300 = vsel %vm1299, %v1291, %v1296
  %v1301 = vrsqrt.pop %v787
  %v1302 = vmul.f32 %v1301, %v787
  %v1303 = vmul.f32 %v1302, %v1301
  %v1304 = vmul.f32 0.5, %v1303
  %v1305 = vsub.f32 1.5, %v1304
  %v1306 = vmul.f32 %v1301, %v1305
  %vm1307 = vweird.f32 %v787
  %vm1308 = vweird.f32 %v1301
  %vm1309 = vmor %vm1307, %vm1308
  %v1310 = vsel %vm1309, %v1301, %v1306
  %v1311 = vrsqrt.pop %v788
  %v1312 = vmul.f32 %v1311, %v788
  %v1313 = vmul.f32 %v1312, %v1311
  %v1314 = vmul.f32 0.5, %v1313
  %v1315 = vsub.f32 1.5, %v1314
  %v1316 = vmul.f32 %v1311, %v1315
  %vm1317 = vweird.f32 %v788
  %vm1318 = vweird.f32 %v1311
  %vm1319 = vmor %vm1317, %vm1318
  %v1320 = vsel %vm1319, %v1311, %v1316
  %v1321 = vrsqrt.pop %v789
  %v1322 = vmul.f32 %v1321, %v789
  %v1323 = vmul.f32 %v1322, %v1321
  %v1324 = vmul.f32 0.5, %v1323
  %v1325 = vsub.f32 1.5, %v1324
  %v1326 = vmul.f32 %v1321, %v1325
  %vm1327 = vweird.f32 %v789
  %vm1328 = vweird.f32 %v1321
  %vm1329 = vmor %vm1327, %vm1328
  %v1330 = vsel %vm1329, %v1321, %v1326
  %v1331 = vrsqrt.pop %v790
  %v1332 = vmul.f32 %v1331, %v790
  %v1333 = vmul.f32 %v1332, %v1331
  %v1334 = vmul.f32 0.5, %v1333
  %v1335 = vsub.f32 1.5, %v1334
  %v1336 = vmul.f32 %v1331, %v1335
  %vm1337 = vweird.f32 %v790
  %vm1338 = vweird.f32 %v1331
  %vm1339 = vmor %vm1337, %vm1338
  %v1340 = vsel %vm1339, %v1331, %v1336
  %v1341 = vrsqrt.pop %v791
  %v1342 = vmul.f32 %v1341, %v791
  %v1343 = vmul.f32 %v1342, %v1341
  %v1344 = vmul.f32 0.5, %v1343
  %v1345 = vsub.f32 1.5, %v1344
  %v1346 = vmul.f32 %v1341, %v1345
  %vm1347 = vweird.f32 %v791
  %vm1348 = vweird.f32 %v1341
  %vm1349 = vmor %vm1347, %vm1348
  %v1350 = vsel %vm1349, %v1341, %v1346
  %v1351 = vrsqrt.pop %v792
  %v1352 = vmul.f32 %v1351, %v792
  %v1353 = vmul.f32 %v1352, %v1351
  %v1354 = vmul.f32 0.5, %v1353
  %v1355 = vsub.f32 1.5, %v1354
  %v1356 = vmul.f32 %v1351, %v1355
  %vm1357 = vweird.f32 %v792
  %vm1358 = vweird.f32 %v1351
  %vm1359 = vmor %vm1357, %vm1358
  %v1360 = vsel %vm1359, %v1351, %v1356
  %v1361 = vrsqrt.pop %v793
  %v1362 = vmul.f32 %v1361, %v793
  %v1363 = vmul.f32 %v1362, %v1361
  %v1364 = vmul.f32 0.5, %v1363
  %v1365 = vsub.f32 1.5, %v1364
  %v1366 = vmul.f32 %v1361, %v1365
  %vm1367 = vweird.f32 %v793
  %vm1368 = vweird.f32 %v1361
  %vm1369 = vmor %vm1367, %vm1368
  %v1370 = vsel %vm1369, %v1361, %v1366
  %v1371 = vrsqrt.pop %v794
  %v1372 = vmul.f32 %v1371, %v794
  %v1373 = vmul.f32 %v1372, %v1371
  %v1374 = vmul.f32 0.5, %v1373
  %v1375 = vsub.f32 1.5, %v1374
  %v1376 = vmul.f32 %v1371, %v1375
  %vm1377 = vweird.f32 %v794
  %vm1378 = vweird.f32 %v1371
  %vm1379 = vmor %vm1377, %vm1378
  %v1380 = vsel %vm1379, %v1371, %v1376
  %v1381 = vrsqrt.pop %v795
  %v1382 = vmul.f32 %v1381, %v795
  %v1383 = vmul.f32 %v1382, %v1381
  %v1384 = vmul.f32 0.5, %v1383
  %v1385 = vsub.f32 1.5, %v1384
  %v1386 = vmul.f32 %v1381, %v1385
  %vm1387 = vweird.f32 %v795
  %vm1388 = vweird.f32 %v1381
  %vm1389 = vmor %vm1387, %vm1388
  %v1390 = vsel %vm1389, %v1381, %v1386
  %v1391 = vrsqrt.pop %v796
  %v1392 = vmul.f32 %v1391, %v796
  %v1393 = vmul.f32 %v1392, %v1391
  %v1394 = vmul.f32 0.5, %v1393
  %v1395 = vsub.f32 1.5, %v1394
  %v1396 = vmul.f32 %v1391, %v1395
  %vm1397 = vweird.f32 %v796
  %vm1398 = vweird.f32 %v1391
  %vm1399 = vmor %vm1397, %vm1398
  %v1400 = vsel %vm1399, %v1391, %v1396
  %v1401 = vrsqrt.pop %v797
  %v1402 = vmul.f32 %v1401, %v797
  %v1403 = vmul.f32 %v1402, %v1401
  %v1404 = vmul.f32 0.5, %v1403
  %v1405 = vsub.f32 1.5, %v1404
  %v1406 = vmul.f32 %v1401, %v1405
  %vm1407 = vweird.f32 %v797
  %vm1408 = vweird.f32 %v1401
  %vm1409 = vmor %vm1407, %vm1408
  %v1410 = vsel %vm1409, %v1401, %v1406
  %v1411 = vrsqrt.pop %v798
  %v1412 = vmul.f32 %v1411, %v798
  %v1413 = vmul.f32 %v1412, %v1411
  %v1414 = vmul.f32 0.5, %v1413
  %v1415 = vsub.f32 1.5, %v1414
  %v1416 = vmul.f32 %v1411, %v1415
  %vm1417 = vweird.f32 %v798
  %vm1418 = vweird.f32 %v1411
  %vm1419 = vmor %vm1417, %vm1418
  %v1420 = vsel %vm1419, %v1411, %v1416
  %v1421 = vrsqrt.pop %v799
  %v1422 = vmul.f32 %v1421, %v799
  %v1423 = vmul.f32 %v1422, %v1421
  %v1424 = vmul.f32 0.5, %v1423
  %v1425 = vsub.f32 1.5, %v1424
  %v1426 = vmul.f32 %v1421, %v1425
  %vm1427 = vweird.f32 %v799
  %vm1428 = vweird.f32 %v1421
  %vm1429 = vmor %vm1427, %vm1428
  %v1430 = vsel %vm1429, %v1421, %v1426
  %v1431 = vrsqrt.pop %v800
  %v1432 = vmul.f32 %v1431, %v800
  %v1433 = vmul.f32 %v1432, %v1431
  %v1434 = vmul.f32 0.5, %v1433
  %v1435 = vsub.f32 1.5, %v1434
  %v1436 = vmul.f32 %v1431, %v1435
  %vm1437 = vweird.f32 %v800
  %vm1438 = vweird.f32 %v1431
  %vm1439 = vmor %vm1437, %vm1438
  %v1440 = vsel %vm1439, %v1431, %v1436
  %v1441 = vmul.f32 %v353, %v810
  %v1442 = vmul.f32 %v354, %v820
  %v1443 = vmul.f32 %v355, %v830
  %v1444 = vmul.f32 %v356, %v840
  %v1445 = vmul.f32 %v357, %v850
  %v1446 = vmul.f32 %v358, %v860
  %v1447 = vmul.f32 %v359, %v870
  %v1448 = vmul.f32 %v360, %v880
  %v1449 = vmul.f32 %v361, %v890
  %v1450 = vmul.f32 %v362, %v900
  %v1451 = vmul.f32 %v363, %v910
  %v1452 = vmul.f32 %v364, %v920
  %v1453 = vmul.f32 %v365, %v930
  %v1454 = vmul.f32 %v366, %v940
  %v1455 = vmul.f32 %v367, %v950
  %v1456 = vmul.f32 %v368, %v960
  %v1457 = vmul.f32 %v369, %v970
  %v1458 = vmul.f32 %v370, %v980
  %v1459 = vmul.f32 %v371, %v990
  %v1460 = vmul.f32 %v372, %v1000
  %v1461 = vmul.f32 %v373, %v1010
  %v1462 = vmul.f32 %v374, %v1020
  %v1463 = vmul.f32 %v375, %v1030
  %v1464 = vmul.f32 %v376, %v1040
  %v1465 = vmul.f32 %v377, %v1050
  %v1466 = vmul.f32 %v378, %v1060
  %v1467 = vmul.f32 %v379, %v1070
  %v1468 = vmul.f32 %v380, %v1080
  %v1469 = vmul.f32 %v381, %v1090
  %v1470 = vmul.f32 %v382, %v1100
  %v1471 = vmul.f32 %v383, %v1110
  %v1472 = vmul.f32 %v384, %v1120
  %v1473 = vmul.f32 %v385, %v1130
  %v1474 = vmul.f32 %v386, %v1140
  %v1475 = vmul.f32 %v387, %v1150
  %v1476 = vmul.f32 %v388, %v1160
  %v1477 = vmul.f32 %v389, %v1170
  %v1478 = vmul.f32 %v390, %v1180
  %v1479 = vmul.f32 %v391, %v1190
  %v1480 = vmul.f32 %v392, %v1200
  %v1481 = vmul.f32 %v393, %v1210
  %v1482 = vmul.f32 %v394, %v1220
  %v1483 = vmul.f32 %v395, %v1230
  %v1484 = vmul.f32 %v396, %v1240
  %v1485 = vmul.f32 %v397, %v1250
  %v1486 = vmul.f32 %v398, %v1260
  %v1487 = vmul.f32 %v399, %v1270
  %v1488 = vmul.f32 %v400, %v1280
  %v1489 = vmul.f32 %v401, %v1290
  %v1490 = vmul.f32 %v402, %v1300
  %v1491 = vmul.f32 %v403, %v1310
  %v1492 = vmul.f32 %v404, %v1320
  %v1493 = vmul.f32 %v405, %v1330
  %v1494 = vmul.f32 %v406, %v1340
  %v1495 = vmul.f32 %v407, %v1350
  %v1496 = vmul.f32 %v408, %v1360
  %v1497 = vmul.f32 %v409, %v1370
  %v1498 = vmul.f32 %v410, %v1380
  %v1499 = vmul.f32 %v411, %v1390
  %v1500 = vmul.f32 %v412, %v1400
  %v1501 = vmul.f32 %v413, %v1410
  %v1502 = vmul.f32 %v414, %v1420
  %v1503 = vmul.f32 %v415, %v1430
  %v1504 = vmul.f32 %v416, %v1440
  %v1506 = vperm.slane %v87, 0
  %v1508 = vmul.f32 %v1441, %v1506
  %v1509 = vmul.f32 %v1442, %v1506
  %v1510 = vmul.f32 %v1443, %v1506
  %v1511 = vmul.f32 %v1444, %v1506
  %v1512 = vmul.f32 %v1445, %v1506
  %v1513 = vmul.f32 %v1446, %v1506
  %v1514 = vmul.f32 %v1447, %v1506
  %v1515 = vmul.f32 %v1448, %v1506
  %v1516 = vmul.f32 %v1449, %v1506
  %v1517 = vmul.f32 %v1450, %v1506
  %v1518 = vmul.f32 %v1451, %v1506
  %v1519 = vmul.f32 %v1452, %v1506
  %v1520 = vmul.f32 %v1453, %v1506
  %v1521 = vmul.f32 %v1454, %v1506
  %v1522 = vmul.f32 %v1455, %v1506
  %v1523 = vmul.f32 %v1456, %v1506
  %v1524 = vmul.f32 %v1457, %v1506
  %v1525 = vmul.f32 %v1458, %v1506
  %v1526 = vmul.f32 %v1459, %v1506
  %v1527 = vmul.f32 %v1460, %v1506
  %v1528 = vmul.f32 %v1461, %v1506
  %v1529 = vmul.f32 %v1462, %v1506
  %v1530 = vmul.f32 %v1463, %v1506
  %v1531 = vmul.f32 %v1464, %v1506
  %v1532 = vmul.f32 %v1465, %v1506
  %v1533 = vmul.f32 %v1466, %v1506
  %v1534 = vmul.f32 %v1467, %v1506
  %v1535 = vmul.f32 %v1468, %v1506
  %v1536 = vmul.f32 %v1469, %v1506
  %v1537 = vmul.f32 %v1470, %v1506
  %v1538 = vmul.f32 %v1471, %v1506
  %v1539 = vmul.f32 %v1472, %v1506
  %v1540 = vmul.f32 %v1473, %v1506
  %v1541 = vmul.f32 %v1474, %v1506
  %v1542 = vmul.f32 %v1475, %v1506
  %v1543 = vmul.f32 %v1476, %v1506
  %v1544 = vmul.f32 %v1477, %v1506
  %v1545 = vmul.f32 %v1478, %v1506
  %v1546 = vmul.f32 %v1479, %v1506
  %v1547 = vmul.f32 %v1480, %v1506
  %v1548 = vmul.f32 %v1481, %v1506
  %v1549 = vmul.f32 %v1482, %v1506
  %v1550 = vmul.f32 %v1483, %v1506
  %v1551 = vmul.f32 %v1484, %v1506
  %v1552 = vmul.f32 %v1485, %v1506
  %v1553 = vmul.f32 %v1486, %v1506
  %v1554 = vmul.f32 %v1487, %v1506
  %v1555 = vmul.f32 %v1488, %v1506
  %v1556 = vmul.f32 %v1489, %v1506
  %v1557 = vmul.f32 %v1490, %v1506
  %v1558 = vmul.f32 %v1491, %v1506
  %v1559 = vmul.f32 %v1492, %v1506
  %v1560 = vmul.f32 %v1493, %v1506
  %v1561 = vmul.f32 %v1494, %v1506
  %v1562 = vmul.f32 %v1495, %v1506
  %v1563 = vmul.f32 %v1496, %v1506
  %v1564 = vmul.f32 %v1497, %v1506
  %v1565 = vmul.f32 %v1498, %v1506
  %v1566 = vmul.f32 %v1499, %v1506
  %v1567 = vmul.f32 %v1500, %v1506
  %v1568 = vmul.f32 %v1501, %v1506
  %v1569 = vmul.f32 %v1502, %v1506
  %v1570 = vmul.f32 %v1503, %v1506
  %v1571 = vmul.f32 %v1504, %v1506
  %v1573 = vperm.slane %v88, 0
  %v1575 = vadd.f32 %v1508, %v1573
  %v1576 = vadd.f32 %v1509, %v1573
  %v1577 = vadd.f32 %v1510, %v1573
  %v1578 = vadd.f32 %v1511, %v1573
  %v1579 = vadd.f32 %v1512, %v1573
  %v1580 = vadd.f32 %v1513, %v1573
  %v1581 = vadd.f32 %v1514, %v1573
  %v1582 = vadd.f32 %v1515, %v1573
  %v1583 = vadd.f32 %v1516, %v1573
  %v1584 = vadd.f32 %v1517, %v1573
  %v1585 = vadd.f32 %v1518, %v1573
  %v1586 = vadd.f32 %v1519, %v1573
  %v1587 = vadd.f32 %v1520, %v1573
  %v1588 = vadd.f32 %v1521, %v1573
  %v1589 = vadd.f32 %v1522, %v1573
  %v1590 = vadd.f32 %v1523, %v1573
  %v1591 = vadd.f32 %v1524, %v1573
  %v1592 = vadd.f32 %v1525, %v1573
  %v1593 = vadd.f32 %v1526, %v1573
  %v1594 = vadd.f32 %v1527, %v1573
  %v1595 = vadd.f32 %v1528, %v1573
  %v1596 = vadd.f32 %v1529, %v1573
  %v1597 = vadd.f32 %v1530, %v1573
  %v1598 = vadd.f32 %v1531, %v1573
  %v1599 = vadd.f32 %v1532, %v1573
  %v1600 = vadd.f32 %v1533, %v1573
  %v1601 = vadd.f32 %v1534, %v1573
  %v1602 = vadd.f32 %v1535, %v1573
  %v1603 = vadd.f32 %v1536, %v1573
  %v1604 = vadd.f32 %v1537, %v1573
  %v1605 = vadd.f32 %v1538, %v1573
  %v1606 = vadd.f32 %v1539, %v1573
  %v1607 = vadd.f32 %v1540, %v1573
  %v1608 = vadd.f32 %v1541, %v1573
  %v1609 = vadd.f32 %v1542, %v1573
  %v1610 = vadd.f32 %v1543, %v1573
  %v1611 = vadd.f32 %v1544, %v1573
  %v1612 = vadd.f32 %v1545, %v1573
  %v1613 = vadd.f32 %v1546, %v1573
  %v1614 = vadd.f32 %v1547, %v1573
  %v1615 = vadd.f32 %v1548, %v1573
  %v1616 = vadd.f32 %v1549, %v1573
  %v1617 = vadd.f32 %v1550, %v1573
  %v1618 = vadd.f32 %v1551, %v1573
  %v1619 = vadd.f32 %v1552, %v1573
  %v1620 = vadd.f32 %v1553, %v1573
  %v1621 = vadd.f32 %v1554, %v1573
  %v1622 = vadd.f32 %v1555, %v1573
  %v1623 = vadd.f32 %v1556, %v1573
  %v1624 = vadd.f32 %v1557, %v1573
  %v1625 = vadd.f32 %v1558, %v1573
  %v1626 = vadd.f32 %v1559, %v1573
  %v1627 = vadd.f32 %v1560, %v1573
  %v1628 = vadd.f32 %v1561, %v1573
  %v1629 = vadd.f32 %v1562, %v1573
  %v1630 = vadd.f32 %v1563, %v1573
  %v1631 = vadd.f32 %v1564, %v1573
  %v1632 = vadd.f32 %v1565, %v1573
  %v1633 = vadd.f32 %v1566, %v1573
  %v1634 = vadd.f32 %v1567, %v1573
  %v1635 = vadd.f32 %v1568, %v1573
  %v1636 = vadd.f32 %v1569, %v1573
  %v1637 = vadd.f32 %v1570, %v1573
  %v1638 = vadd.f32 %v1571, %v1573
  %v1639 = vld [vmem:[%s3] sm:$0xff]
  %v1640 = vld [vmem:[%s3 + $0x8] sm:$0xff]
  %v1641 = vld [vmem:[%s3 + $0x10] sm:$0xff]
  %v1642 = vld [vmem:[%s3 + $0x18] sm:$0xff]
  %v1643 = vld [vmem:[%s4] sm:$0x1]
  %v1645 = vperm.slane %v1643, 0
  %v1648 = vsel %vm89, %v1575, 0
  %v1651 = vsel %vm89, %v1576, 0
  %v1654 = vsel %vm89, %v1577, 0
  %v1657 = vsel %vm89, %v1578, 0
  %v1660 = vsel %vm89, %v1579, 0
  %v1663 = vsel %vm89, %v1580, 0
  %v1666 = vsel %vm89, %v1581, 0
  %v1669 = vsel %vm89, %v1582, 0
  %v1672 = vsel %vm89, %v1583, 0
  %v1675 = vsel %vm89, %v1584, 0
  %v1678 = vsel %vm89, %v1585, 0
  %v1681 = vsel %vm89, %v1586, 0
  %v1684 = vsel %vm89, %v1587, 0
  %v1687 = vsel %vm89, %v1588, 0
  %v1690 = vsel %vm89, %v1589, 0
  %v1693 = vsel %vm89, %v1590, 0
  %v1696 = vsel %vm89, %v1591, 0
  %v1699 = vsel %vm89, %v1592, 0
  %v1702 = vsel %vm89, %v1593, 0
  %v1705 = vsel %vm89, %v1594, 0
  %v1708 = vsel %vm89, %v1595, 0
  %v1711 = vsel %vm89, %v1596, 0
  %v1714 = vsel %vm89, %v1597, 0
  %v1717 = vsel %vm89, %v1598, 0
  %v1720 = vsel %vm89, %v1599, 0
  %v1723 = vsel %vm89, %v1600, 0
  %v1726 = vsel %vm89, %v1601, 0
  %v1729 = vsel %vm89, %v1602, 0
  %v1732 = vsel %vm89, %v1603, 0
  %v1735 = vsel %vm89, %v1604, 0
  %v1738 = vsel %vm89, %v1605, 0
  %v1741 = vsel %vm89, %v1606, 0
  %v1744 = vsel %vm89, %v1607, 0
  %v1747 = vsel %vm89, %v1608, 0
  %v1750 = vsel %vm89, %v1609, 0
  %v1753 = vsel %vm89, %v1610, 0
  %v1756 = vsel %vm89, %v1611, 0
  %v1759 = vsel %vm89, %v1612, 0
  %v1762 = vsel %vm89, %v1613, 0
  %v1765 = vsel %vm89, %v1614, 0
  %v1768 = vsel %vm89, %v1615, 0
  %v1771 = vsel %vm89, %v1616, 0
  %v1774 = vsel %vm89, %v1617, 0
  %v1777 = vsel %vm89, %v1618, 0
  %v1780 = vsel %vm89, %v1619, 0
  %v1783 = vsel %vm89, %v1620, 0
  %v1786 = vsel %vm89, %v1621, 0
  %v1789 = vsel %vm89, %v1622, 0
  %v1792 = vsel %vm89, %v1623, 0
  %v1795 = vsel %vm89, %v1624, 0
  %v1798 = vsel %vm89, %v1625, 0
  %v1801 = vsel %vm89, %v1626, 0
  %v1804 = vsel %vm89, %v1627, 0
  %v1807 = vsel %vm89, %v1628, 0
  %v1810 = vsel %vm89, %v1629, 0
  %v1813 = vsel %vm89, %v1630, 0
  %v1816 = vsel %vm89, %v1631, 0
  %v1819 = vsel %vm89, %v1632, 0
  %v1822 = vsel %vm89, %v1633, 0
  %v1825 = vsel %vm89, %v1634, 0
  %v1828 = vsel %vm89, %v1635, 0
  %v1831 = vsel %vm89, %v1636, 0
  %v1834 = vsel %vm89, %v1637, 0
  %v1837 = vsel %vm89, %v1638, 0
  %1839 = vmatpush.msra.mxu0 0.0
  %1840 = vmatpush.msra.mxu0 0.0
  %1841 = vmatpush.msra.mxu0 0.0
  %1842 = vmatpush.msra.mxu0 0.0
  %1843 = vmatpush.msra.mxu0 0.0
  %1844 = vmatpush.msra.mxu0 0.0
  %1845 = vmatpush.msra.mxu0 0.0
  %1846 = vmatpush.msra.mxu0 0.0
  %1847 = vmatpush.msra.mxu0 0.0
  %1848 = vmatpush.msra.mxu0 0.0
  %1849 = vmatpush.msra.mxu0 0.0
  %1850 = vmatpush.msra.mxu0 0.0
  %1851 = vmatpush.msra.mxu0 %v1642
  %1852 = vmatpush.msra.mxu0 %v1641
  %1853 = vmatpush.msra.mxu0 %v1640
  %1854 = vmatpush.msra.mxu0 %v1639
  %1855 = vmatmul.f32.gmra.mxu0 %v1648
  %v1856 = vpop.f32.mrf.mxu0
  %v1857 = vadd.f32 %v1645, %v1856
  %1858 = vmatmul.f32.gmra.mxu0 %v1651
  %v1859 = vpop.f32.mrf.mxu0
  %v1860 = vadd.f32 %v1645, %v1859
  %1861 = vmatmul.f32.gmra.mxu0 %v1654
  %v1862 = vpop.f32.mrf.mxu0
  %v1863 = vadd.f32 %v1645, %v1862
  %1864 = vmatmul.f32.gmra.mxu0 %v1657
  %v1865 = vpop.f32.mrf.mxu0
  %v1866 = vadd.f32 %v1645, %v1865
  %1867 = vmatmul.f32.gmra.mxu0 %v1660
  %v1868 = vpop.f32.mrf.mxu0
  %v1869 = vadd.f32 %v1645, %v1868
  %1870 = vmatmul.f32.gmra.mxu0 %v1663
  %v1871 = vpop.f32.mrf.mxu0
  %v1872 = vadd.f32 %v1645, %v1871
  %1873 = vmatmul.f32.gmra.mxu0 %v1666
  %v1874 = vpop.f32.mrf.mxu0
  %v1875 = vadd.f32 %v1645, %v1874
  %1876 = vmatmul.f32.gmra.mxu0 %v1669
  %v1877 = vpop.f32.mrf.mxu0
  %v1878 = vadd.f32 %v1645, %v1877
  %1879 = vmatmul.f32.gmra.mxu0 %v1672
  %v1880 = vpop.f32.mrf.mxu0
  %v1881 = vadd.f32 %v1645, %v1880
  %1882 = vmatmul.f32.gmra.mxu0 %v1675
  %v1883 = vpop.f32.mrf.mxu0
  %v1884 = vadd.f32 %v1645, %v1883
  %1885 = vmatmul.f32.gmra.mxu0 %v1678
  %v1886 = vpop.f32.mrf.mxu0
  %v1887 = vadd.f32 %v1645, %v1886
  %1888 = vmatmul.f32.gmra.mxu0 %v1681
  %v1889 = vpop.f32.mrf.mxu0
  %v1890 = vadd.f32 %v1645, %v1889
  %1891 = vmatmul.f32.gmra.mxu0 %v1684
  %v1892 = vpop.f32.mrf.mxu0
  %v1893 = vadd.f32 %v1645, %v1892
  %1894 = vmatmul.f32.gmra.mxu0 %v1687
  %v1895 = vpop.f32.mrf.mxu0
  %v1896 = vadd.f32 %v1645, %v1895
  %1897 = vmatmul.f32.gmra.mxu0 %v1690
  %v1898 = vpop.f32.mrf.mxu0
  %v1899 = vadd.f32 %v1645, %v1898
  %1900 = vmatmul.f32.gmra.mxu0 %v1693
  %v1901 = vpop.f32.mrf.mxu0
  %v1902 = vadd.f32 %v1645, %v1901
  %1903 = vmatmul.f32.gmra.mxu0 %v1696
  %v1904 = vpop.f32.mrf.mxu0
  %v1905 = vadd.f32 %v1645, %v1904
  %1906 = vmatmul.f32.gmra.mxu0 %v1699
  %v1907 = vpop.f32.mrf.mxu0
  %v1908 = vadd.f32 %v1645, %v1907
  %1909 = vmatmul.f32.gmra.mxu0 %v1702
  %v1910 = vpop.f32.mrf.mxu0
  %v1911 = vadd.f32 %v1645, %v1910
  %1912 = vmatmul.f32.gmra.mxu0 %v1705
  %v1913 = vpop.f32.mrf.mxu0
  %v1914 = vadd.f32 %v1645, %v1913
  %1915 = vmatmul.f32.gmra.mxu0 %v1708
  %v1916 = vpop.f32.mrf.mxu0
  %v1917 = vadd.f32 %v1645, %v1916
  %1918 = vmatmul.f32.gmra.mxu0 %v1711
  %v1919 = vpop.f32.mrf.mxu0
  %v1920 = vadd.f32 %v1645, %v1919
  %1921 = vmatmul.f32.gmra.mxu0 %v1714
  %v1922 = vpop.f32.mrf.mxu0
  %v1923 = vadd.f32 %v1645, %v1922
  %1924 = vmatmul.f32.gmra.mxu0 %v1717
  %v1925 = vpop.f32.mrf.mxu0
  %v1926 = vadd.f32 %v1645, %v1925
  %1927 = vmatmul.f32.gmra.mxu0 %v1720
  %v1928 = vpop.f32.mrf.mxu0
  %v1929 = vadd.f32 %v1645, %v1928
  %1930 = vmatmul.f32.gmra.mxu0 %v1723
  %v1931 = vpop.f32.mrf.mxu0
  %v1932 = vadd.f32 %v1645, %v1931
  %1933 = vmatmul.f32.gmra.mxu0 %v1726
  %v1934 = vpop.f32.mrf.mxu0
  %v1935 = vadd.f32 %v1645, %v1934
  %1936 = vmatmul.f32.gmra.mxu0 %v1729
  %v1937 = vpop.f32.mrf.mxu0
  %v1938 = vadd.f32 %v1645, %v1937
  %1939 = vmatmul.f32.gmra.mxu0 %v1732
  %v1940 = vpop.f32.mrf.mxu0
  %v1941 = vadd.f32 %v1645, %v1940
  %1942 = vmatmul.f32.gmra.mxu0 %v1735
  %v1943 = vpop.f32.mrf.mxu0
  %v1944 = vadd.f32 %v1645, %v1943
  %1945 = vmatmul.f32.gmra.mxu0 %v1738
  %v1946 = vpop.f32.mrf.mxu0
  %v1947 = vadd.f32 %v1645, %v1946
  %1948 = vmatmul.f32.gmra.mxu0 %v1741
  %v1949 = vpop.f32.mrf.mxu0
  %v1950 = vadd.f32 %v1645, %v1949
  %1951 = vmatmul.f32.gmra.mxu0 %v1744
  %v1952 = vpop.f32.mrf.mxu0
  %v1953 = vadd.f32 %v1645, %v1952
  %1954 = vmatmul.f32.gmra.mxu0 %v1747
  %v1955 = vpop.f32.mrf.mxu0
  %v1956 = vadd.f32 %v1645, %v1955
  %1957 = vmatmul.f32.gmra.mxu0 %v1750
  %v1958 = vpop.f32.mrf.mxu0
  %v1959 = vadd.f32 %v1645, %v1958
  %1960 = vmatmul.f32.gmra.mxu0 %v1753
  %v1961 = vpop.f32.mrf.mxu0
  %v1962 = vadd.f32 %v1645, %v1961
  %1963 = vmatmul.f32.gmra.mxu0 %v1756
  %v1964 = vpop.f32.mrf.mxu0
  %v1965 = vadd.f32 %v1645, %v1964
  %1966 = vmatmul.f32.gmra.mxu0 %v1759
  %v1967 = vpop.f32.mrf.mxu0
  %v1968 = vadd.f32 %v1645, %v1967
  %1969 = vmatmul.f32.gmra.mxu0 %v1762
  %v1970 = vpop.f32.mrf.mxu0
  %v1971 = vadd.f32 %v1645, %v1970
  %1972 = vmatmul.f32.gmra.mxu0 %v1765
  %v1973 = vpop.f32.mrf.mxu0
  %v1974 = vadd.f32 %v1645, %v1973
  %1975 = vmatmul.f32.gmra.mxu0 %v1768
  %v1976 = vpop.f32.mrf.mxu0
  %v1977 = vadd.f32 %v1645, %v1976
  %1978 = vmatmul.f32.gmra.mxu0 %v1771
  %v1979 = vpop.f32.mrf.mxu0
  %v1980 = vadd.f32 %v1645, %v1979
  %1981 = vmatmul.f32.gmra.mxu0 %v1774
  %v1982 = vpop.f32.mrf.mxu0
  %v1983 = vadd.f32 %v1645, %v1982
  %1984 = vmatmul.f32.gmra.mxu0 %v1777
  %v1985 = vpop.f32.mrf.mxu0
  %v1986 = vadd.f32 %v1645, %v1985
  %1987 = vmatmul.f32.gmra.mxu0 %v1780
  %v1988 = vpop.f32.mrf.mxu0
  %v1989 = vadd.f32 %v1645, %v1988
  %1990 = vmatmul.f32.gmra.mxu0 %v1783
  %v1991 = vpop.f32.mrf.mxu0
  %v1992 = vadd.f32 %v1645, %v1991
  %1993 = vmatmul.f32.gmra.mxu0 %v1786
  %v1994 = vpop.f32.mrf.mxu0
  %v1995 = vadd.f32 %v1645, %v1994
  %1996 = vmatmul.f32.gmra.mxu0 %v1789
  %v1997 = vpop.f32.mrf.mxu0
  %v1998 = vadd.f32 %v1645, %v1997
  %1999 = vmatmul.f32.gmra.mxu0 %v1792
  %v2000 = vpop.f32.mrf.mxu0
  %v2001 = vadd.f32 %v1645, %v2000
  %2002 = vmatmul.f32.gmra.mxu0 %v1795
  %v2003 = vpop.f32.mrf.mxu0
  %v2004 = vadd.f32 %v1645, %v2003
  %2005 = vmatmul.f32.gmra.mxu0 %v1798
  %v2006 = vpop.f32.mrf.mxu0
  %v2007 = vadd.f32 %v1645, %v2006
  %2008 = vmatmul.f32.gmra.mxu0 %v1801
  %v2009 = vpop.f32.mrf.mxu0
  %v2010 = vadd.f32 %v1645, %v2009
  %2011 = vmatmul.f32.gmra.mxu0 %v1804
  %v2012 = vpop.f32.mrf.mxu0
  %v2013 = vadd.f32 %v1645, %v2012
  %2014 = vmatmul.f32.gmra.mxu0 %v1807
  %v2015 = vpop.f32.mrf.mxu0
  %v2016 = vadd.f32 %v1645, %v2015
  %2017 = vmatmul.f32.gmra.mxu0 %v1810
  %v2018 = vpop.f32.mrf.mxu0
  %v2019 = vadd.f32 %v1645, %v2018
  %2020 = vmatmul.f32.gmra.mxu0 %v1813
  %v2021 = vpop.f32.mrf.mxu0
  %v2022 = vadd.f32 %v1645, %v2021
  %2023 = vmatmul.f32.gmra.mxu0 %v1816
  %v2024 = vpop.f32.mrf.mxu0
  %v2025 = vadd.f32 %v1645, %v2024
  %2026 = vmatmul.f32.gmra.mxu0 %v1819
  %v2027 = vpop.f32.mrf.mxu0
  %v2028 = vadd.f32 %v1645, %v2027
  %2029 = vmatmul.f32.gmra.mxu0 %v1822
  %v2030 = vpop.f32.mrf.mxu0
  %v2031 = vadd.f32 %v1645, %v2030
  %2032 = vmatmul.f32.gmra.mxu0 %v1825
  %v2033 = vpop.f32.mrf.mxu0
  %v2034 = vadd.f32 %v1645, %v2033
  %2035 = vmatmul.f32.gmra.mxu0 %v1828
  %v2036 = vpop.f32.mrf.mxu0
  %v2037 = vadd.f32 %v1645, %v2036
  %2038 = vmatmul.f32.gmra.mxu0 %v1831
  %v2039 = vpop.f32.mrf.mxu0
  %v2040 = vadd.f32 %v1645, %v2039
  %2041 = vmatmul.f32.gmra.mxu0 %v1834
  %v2042 = vpop.f32.mrf.mxu0
  %v2043 = vadd.f32 %v1645, %v2042
  %2044 = vmatmul.f32.gmra.mxu0 %v1837
  %v2045 = vpop.f32.mrf.mxu0
  %v2046 = vadd.f32 %v1645, %v2045
  %2047 = vdwg.mxu0
  %2048 = vst.msk [vmem:[%s5] sm:$0xff] %vm89, %v1857
  %2049 = vst.msk [vmem:[%s5 + $0x8] sm:$0xff] %vm89, %v1860
  %2050 = vst.msk [vmem:[%s5 + $0x10] sm:$0xff] %vm89, %v1863
  %2051 = vst.msk [vmem:[%s5 + $0x18] sm:$0xff] %vm89, %v1866
  %2052 = vst.msk [vmem:[%s5 + $0x20] sm:$0xff] %vm89, %v1869
  %2053 = vst.msk [vmem:[%s5 + $0x28] sm:$0xff] %vm89, %v1872
  %2054 = vst.msk [vmem:[%s5 + $0x30] sm:$0xff] %vm89, %v1875
  %2055 = vst.msk [vmem:[%s5 + $0x38] sm:$0xff] %vm89, %v1878
  %2056 = vst.msk [vmem:[%s5 + $0x40] sm:$0xff] %vm89, %v1881
  %2057 = vst.msk [vmem:[%s5 + $0x48] sm:$0xff] %vm89, %v1884
  %2058 = vst.msk [vmem:[%s5 + $0x50] sm:$0xff] %vm89, %v1887
  %2059 = vst.msk [vmem:[%s5 + $0x58] sm:$0xff] %vm89, %v1890
  %2060 = vst.msk [vmem:[%s5 + $0x60] sm:$0xff] %vm89, %v1893
  %2061 = vst.msk [vmem:[%s5 + $0x68] sm:$0xff] %vm89, %v1896
  %2062 = vst.msk [vmem:[%s5 + $0x70] sm:$0xff] %vm89, %v1899
  %2063 = vst.msk [vmem:[%s5 + $0x78] sm:$0xff] %vm89, %v1902
  %2064 = vst.msk [vmem:[%s5 + $0x80] sm:$0xff] %vm89, %v1905
  %2065 = vst.msk [vmem:[%s5 + $0x88] sm:$0xff] %vm89, %v1908
  %2066 = vst.msk [vmem:[%s5 + $0x90] sm:$0xff] %vm89, %v1911
  %2067 = vst.msk [vmem:[%s5 + $0x98] sm:$0xff] %vm89, %v1914
  %2068 = vst.msk [vmem:[%s5 + $0xa0] sm:$0xff] %vm89, %v1917
  %2069 = vst.msk [vmem:[%s5 + $0xa8] sm:$0xff] %vm89, %v1920
  %2070 = vst.msk [vmem:[%s5 + $0xb0] sm:$0xff] %vm89, %v1923
  %2071 = vst.msk [vmem:[%s5 + $0xb8] sm:$0xff] %vm89, %v1926
  %2072 = vst.msk [vmem:[%s5 + $0xc0] sm:$0xff] %vm89, %v1929
  %2073 = vst.msk [vmem:[%s5 + $0xc8] sm:$0xff] %vm89, %v1932
  %2074 = vst.msk [vmem:[%s5 + $0xd0] sm:$0xff] %vm89, %v1935
  %2075 = vst.msk [vmem:[%s5 + $0xd8] sm:$0xff] %vm89, %v1938
  %2076 = vst.msk [vmem:[%s5 + $0xe0] sm:$0xff] %vm89, %v1941
  %2077 = vst.msk [vmem:[%s5 + $0xe8] sm:$0xff] %vm89, %v1944
  %2078 = vst.msk [vmem:[%s5 + $0xf0] sm:$0xff] %vm89, %v1947
  %2079 = vst.msk [vmem:[%s5 + $0xf8] sm:$0xff] %vm89, %v1950
  %2080 = vst.msk [vmem:[%s5 + $0x100] sm:$0xff] %vm89, %v1953
  %2081 = vst.msk [vmem:[%s5 + $0x108] sm:$0xff] %vm89, %v1956
  %2082 = vst.msk [vmem:[%s5 + $0x110] sm:$0xff] %vm89, %v1959
  %2083 = vst.msk [vmem:[%s5 + $0x118] sm:$0xff] %vm89, %v1962
  %2084 = vst.msk [vmem:[%s5 + $0x120] sm:$0xff] %vm89, %v1965
  %2085 = vst.msk [vmem:[%s5 + $0x128] sm:$0xff] %vm89, %v1968
  %2086 = vst.msk [vmem:[%s5 + $0x130] sm:$0xff] %vm89, %v1971
  %2087 = vst.msk [vmem:[%s5 + $0x138] sm:$0xff] %vm89, %v1974
  %2088 = vst.msk [vmem:[%s5 + $0x140] sm:$0xff] %vm89, %v1977
  %2089 = vst.msk [vmem:[%s5 + $0x148] sm:$0xff] %vm89, %v1980
  %2090 = vst.msk [vmem:[%s5 + $0x150] sm:$0xff] %vm89, %v1983
  %2091 = vst.msk [vmem:[%s5 + $0x158] sm:$0xff] %vm89, %v1986
  %2092 = vst.msk [vmem:[%s5 + $0x160] sm:$0xff] %vm89, %v1989
  %2093 = vst.msk [vmem:[%s5 + $0x168] sm:$0xff] %vm89, %v1992
  %2094 = vst.msk [vmem:[%s5 + $0x170] sm:$0xff] %vm89, %v1995
  %2095 = vst.msk [vmem:[%s5 + $0x178] sm:$0xff] %vm89, %v1998
  %2096 = vst.msk [vmem:[%s5 + $0x180] sm:$0xff] %vm89, %v2001
  %2097 = vst.msk [vmem:[%s5 + $0x188] sm:$0xff] %vm89, %v2004
  %2098 = vst.msk [vmem:[%s5 + $0x190] sm:$0xff] %vm89, %v2007
  %2099 = vst.msk [vmem:[%s5 + $0x198] sm:$0xff] %vm89, %v2010
  %2100 = vst.msk [vmem:[%s5 + $0x1a0] sm:$0xff] %vm89, %v2013
  %2101 = vst.msk [vmem:[%s5 + $0x1a8] sm:$0xff] %vm89, %v2016
  %2102 = vst.msk [vmem:[%s5 + $0x1b0] sm:$0xff] %vm89, %v2019
  %2103 = vst.msk [vmem:[%s5 + $0x1b8] sm:$0xff] %vm89, %v2022
  %2104 = vst.msk [vmem:[%s5 + $0x1c0] sm:$0xff] %vm89, %v2025
  %2105 = vst.msk [vmem:[%s5 + $0x1c8] sm:$0xff] %vm89, %v2028
  %2106 = vst.msk [vmem:[%s5 + $0x1d0] sm:$0xff] %vm89, %v2031
  %2107 = vst.msk [vmem:[%s5 + $0x1d8] sm:$0xff] %vm89, %v2034
  %2108 = vst.msk [vmem:[%s5 + $0x1e0] sm:$0xff] %vm89, %v2037
  %2109 = vst.msk [vmem:[%s5 + $0x1e8] sm:$0xff] %vm89, %v2040
  %2110 = vst.msk [vmem:[%s5 + $0x1f0] sm:$0xff] %vm89, %v2043
  %2111 = vst.msk [vmem:[%s5 + $0x1f8] sm:$0xff] %vm89, %v2046
  %2176 = vrot.lane.b32.xlu0 %v1857, 96
  %v2177 = vpop.permute.xlu0 %2176
  %2178 = vrot.lane.b32.xlu0 %v1860, 96
  %v2179 = vpop.permute.xlu0 %2178
  %2180 = vrot.lane.b32.xlu0 %v1863, 96
  %v2181 = vpop.permute.xlu0 %2180
  %2182 = vrot.lane.b32.xlu0 %v1866, 96
  %v2183 = vpop.permute.xlu0 %2182
  %2184 = vrot.lane.b32.xlu0 %v1869, 96
  %v2185 = vpop.permute.xlu0 %2184
  %2186 = vrot.lane.b32.xlu0 %v1872, 96
  %v2187 = vpop.permute.xlu0 %2186
  %2188 = vrot.lane.b32.xlu0 %v1875, 96
  %v2189 = vpop.permute.xlu0 %2188
  %2190 = vrot.lane.b32.xlu0 %v1878, 96
  %v2191 = vpop.permute.xlu0 %2190
  %2192 = vrot.lane.b32.xlu0 %v1881, 96
  %v2193 = vpop.permute.xlu0 %2192
  %2194 = vrot.lane.b32.xlu0 %v1884, 96
  %v2195 = vpop.permute.xlu0 %2194
  %2196 = vrot.lane.b32.xlu0 %v1887, 96
  %v2197 = vpop.permute.xlu0 %2196
  %2198 = vrot.lane.b32.xlu0 %v1890, 96
  %v2199 = vpop.permute.xlu0 %2198
  %2200 = vrot.lane.b32.xlu0 %v1893, 96
  %v2201 = vpop.permute.xlu0 %2200
  %2202 = vrot.lane.b32.xlu0 %v1896, 96
  %v2203 = vpop.permute.xlu0 %2202
  %2204 = vrot.lane.b32.xlu0 %v1899, 96
  %v2205 = vpop.permute.xlu0 %2204
  %2206 = vrot.lane.b32.xlu0 %v1902, 96
  %v2207 = vpop.permute.xlu0 %2206
  %2208 = vrot.lane.b32.xlu0 %v1905, 96
  %v2209 = vpop.permute.xlu0 %2208
  %2210 = vrot.lane.b32.xlu0 %v1908, 96
  %v2211 = vpop.permute.xlu0 %2210
  %2212 = vrot.lane.b32.xlu0 %v1911, 96
  %v2213 = vpop.permute.xlu0 %2212
  %2214 = vrot.lane.b32.xlu0 %v1914, 96
  %v2215 = vpop.permute.xlu0 %2214
  %2216 = vrot.lane.b32.xlu0 %v1917, 96
  %v2217 = vpop.permute.xlu0 %2216
  %2218 = vrot.lane.b32.xlu0 %v1920, 96
  %v2219 = vpop.permute.xlu0 %2218
  %2220 = vrot.lane.b32.xlu0 %v1923, 96
  %v2221 = vpop.permute.xlu0 %2220
  %2222 = vrot.lane.b32.xlu0 %v1926, 96
  %v2223 = vpop.permute.xlu0 %2222
  %2224 = vrot.lane.b32.xlu0 %v1929, 96
  %v2225 = vpop.permute.xlu0 %2224
  %2226 = vrot.lane.b32.xlu0 %v1932, 96
  %v2227 = vpop.permute.xlu0 %2226
  %2228 = vrot.lane.b32.xlu0 %v1935, 96
  %v2229 = vpop.permute.xlu0 %2228
  %2230 = vrot.lane.b32.xlu0 %v1938, 96
  %v2231 = vpop.permute.xlu0 %2230
  %2232 = vrot.lane.b32.xlu0 %v1941, 96
  %v2233 = vpop.permute.xlu0 %2232
  %2234 = vrot.lane.b32.xlu0 %v1944, 96
  %v2235 = vpop.permute.xlu0 %2234
  %2236 = vrot.lane.b32.xlu0 %v1947, 96
  %v2237 = vpop.permute.xlu0 %2236
  %2238 = vrot.lane.b32.xlu0 %v1950, 96
  %v2239 = vpop.permute.xlu0 %2238
  %2240 = vrot.lane.b32.xlu0 %v1953, 96
  %v2241 = vpop.permute.xlu0 %2240
  %2242 = vrot.lane.b32.xlu0 %v1956, 96
  %v2243 = vpop.permute.xlu0 %2242
  %2244 = vrot.lane.b32.xlu0 %v1959, 96
  %v2245 = vpop.permute.xlu0 %2244
  %2246 = vrot.lane.b32.xlu0 %v1962, 96
  %v2247 = vpop.permute.xlu0 %2246
  %2248 = vrot.lane.b32.xlu0 %v1965, 96
  %v2249 = vpop.permute.xlu0 %2248
  %2250 = vrot.lane.b32.xlu0 %v1968, 96
  %v2251 = vpop.permute.xlu0 %2250
  %2252 = vrot.lane.b32.xlu0 %v1971, 96
  %v2253 = vpop.permute.xlu0 %2252
  %2254 = vrot.lane.b32.xlu0 %v1974, 96
  %v2255 = vpop.permute.xlu0 %2254
  %2256 = vrot.lane.b32.xlu0 %v1977, 96
  %v2257 = vpop.permute.xlu0 %2256
  %2258 = vrot.lane.b32.xlu0 %v1980, 96
  %v2259 = vpop.permute.xlu0 %2258
  %2260 = vrot.lane.b32.xlu0 %v1983, 96
  %v2261 = vpop.permute.xlu0 %2260
  %2262 = vrot.lane.b32.xlu0 %v1986, 96
  %v2263 = vpop.permute.xlu0 %2262
  %2264 = vrot.lane.b32.xlu0 %v1989, 96
  %v2265 = vpop.permute.xlu0 %2264
  %2266 = vrot.lane.b32.xlu0 %v1992, 96
  %v2267 = vpop.permute.xlu0 %2266
  %2268 = vrot.lane.b32.xlu0 %v1995, 96
  %v2269 = vpop.permute.xlu0 %2268
  %2270 = vrot.lane.b32.xlu0 %v1998, 96
  %v2271 = vpop.permute.xlu0 %2270
  %2272 = vrot.lane.b32.xlu0 %v2001, 96
  %v2273 = vpop.permute.xlu0 %2272
  %2274 = vrot.lane.b32.xlu0 %v2004, 96
  %v2275 = vpop.permute.xlu0 %2274
  %2276 = vrot.lane.b32.xlu0 %v2007, 96
  %v2277 = vpop.permute.xlu0 %2276
  %2278 = vrot.lane.b32.xlu0 %v2010, 96
  %v2279 = vpop.permute.xlu0 %2278
  %2280 = vrot.lane.b32.xlu0 %v2013, 96
  %v2281 = vpop.permute.xlu0 %2280
  %2282 = vrot.lane.b32.xlu0 %v2016, 96
  %v2283 = vpop.permute.xlu0 %2282
  %2284 = vrot.lane.b32.xlu0 %v2019, 96
  %v2285 = vpop.permute.xlu0 %2284
  %2286 = vrot.lane.b32.xlu0 %v2022, 96
  %v2287 = vpop.permute.xlu0 %2286
  %2288 = vrot.lane.b32.xlu0 %v2025, 96
  %v2289 = vpop.permute.xlu0 %2288
  %2290 = vrot.lane.b32.xlu0 %v2028, 96
  %v2291 = vpop.permute.xlu0 %2290
  %2292 = vrot.lane.b32.xlu0 %v2031, 96
  %v2293 = vpop.permute.xlu0 %2292
  %2294 = vrot.lane.b32.xlu0 %v2034, 96
  %v2295 = vpop.permute.xlu0 %2294
  %2296 = vrot.lane.b32.xlu0 %v2037, 96
  %v2297 = vpop.permute.xlu0 %2296
  %2298 = vrot.lane.b32.xlu0 %v2040, 96
  %v2299 = vpop.permute.xlu0 %2298
  %2300 = vrot.lane.b32.xlu0 %v2043, 96
  %v2301 = vpop.permute.xlu0 %2300
  %2302 = vrot.lane.b32.xlu0 %v2046, 96
  %v2303 = vpop.permute.xlu0 %2302
  %2368 = vst.msk [vmem:[%s6] sm:$0xff] %vm89, %v2177
  %2369 = vst.msk [vmem:[%s6 + $0x8] sm:$0xff] %vm89, %v2179
  %2370 = vst.msk [vmem:[%s6 + $0x10] sm:$0xff] %vm89, %v2181
  %2371 = vst.msk [vmem:[%s6 + $0x18] sm:$0xff] %vm89, %v2183
  %2372 = vst.msk [vmem:[%s6 + $0x20] sm:$0xff] %vm89, %v2185
  %2373 = vst.msk [vmem:[%s6 + $0x28] sm:$0xff] %vm89, %v2187
  %2374 = vst.msk [vmem:[%s6 + $0x30] sm:$0xff] %vm89, %v2189
  %2375 = vst.msk [vmem:[%s6 + $0x38] sm:$0xff] %vm89, %v2191
  %2376 = vst.msk [vmem:[%s6 + $0x40] sm:$0xff] %vm89, %v2193
  %2377 = vst.msk [vmem:[%s6 + $0x48] sm:$0xff] %vm89, %v2195
  %2378 = vst.msk [vmem:[%s6 + $0x50] sm:$0xff] %vm89, %v2197
  %2379 = vst.msk [vmem:[%s6 + $0x58] sm:$0xff] %vm89, %v2199
  %2380 = vst.msk [vmem:[%s6 + $0x60] sm:$0xff] %vm89, %v2201
  %2381 = vst.msk [vmem:[%s6 + $0x68] sm:$0xff] %vm89, %v2203
  %2382 = vst.msk [vmem:[%s6 + $0x70] sm:$0xff] %vm89, %v2205
  %2383 = vst.msk [vmem:[%s6 + $0x78] sm:$0xff] %vm89, %v2207
  %2384 = vst.msk [vmem:[%s6 + $0x80] sm:$0xff] %vm89, %v2209
  %2385 = vst.msk [vmem:[%s6 + $0x88] sm:$0xff] %vm89, %v2211
  %2386 = vst.msk [vmem:[%s6 + $0x90] sm:$0xff] %vm89, %v2213
  %2387 = vst.msk [vmem:[%s6 + $0x98] sm:$0xff] %vm89, %v2215
  %2388 = vst.msk [vmem:[%s6 + $0xa0] sm:$0xff] %vm89, %v2217
  %2389 = vst.msk [vmem:[%s6 + $0xa8] sm:$0xff] %vm89, %v2219
  %2390 = vst.msk [vmem:[%s6 + $0xb0] sm:$0xff] %vm89, %v2221
  %2391 = vst.msk [vmem:[%s6 + $0xb8] sm:$0xff] %vm89, %v2223
  %2392 = vst.msk [vmem:[%s6 + $0xc0] sm:$0xff] %vm89, %v2225
  %2393 = vst.msk [vmem:[%s6 + $0xc8] sm:$0xff] %vm89, %v2227
  %2394 = vst.msk [vmem:[%s6 + $0xd0] sm:$0xff] %vm89, %v2229
  %2395 = vst.msk [vmem:[%s6 + $0xd8] sm:$0xff] %vm89, %v2231
  %2396 = vst.msk [vmem:[%s6 + $0xe0] sm:$0xff] %vm89, %v2233
  %2397 = vst.msk [vmem:[%s6 + $0xe8] sm:$0xff] %vm89, %v2235
  %2398 = vst.msk [vmem:[%s6 + $0xf0] sm:$0xff] %vm89, %v2237
  %2399 = vst.msk [vmem:[%s6 + $0xf8] sm:$0xff] %vm89, %v2239
  %2400 = vst.msk [vmem:[%s6 + $0x100] sm:$0xff] %vm89, %v2241
  %2401 = vst.msk [vmem:[%s6 + $0x108] sm:$0xff] %vm89, %v2243
  %2402 = vst.msk [vmem:[%s6 + $0x110] sm:$0xff] %vm89, %v2245
  %2403 = vst.msk [vmem:[%s6 + $0x118] sm:$0xff] %vm89, %v2247
  %2404 = vst.msk [vmem:[%s6 + $0x120] sm:$0xff] %vm89, %v2249
  %2405 = vst.msk [vmem:[%s6 + $0x128] sm:$0xff] %vm89, %v2251
  %2406 = vst.msk [vmem:[%s6 + $0x130] sm:$0xff] %vm89, %v2253
  %2407 = vst.msk [vmem:[%s6 + $0x138] sm:$0xff] %vm89, %v2255
  %2408 = vst.msk [vmem:[%s6 + $0x140] sm:$0xff] %vm89, %v2257
  %2409 = vst.msk [vmem:[%s6 + $0x148] sm:$0xff] %vm89, %v2259
  %2410 = vst.msk [vmem:[%s6 + $0x150] sm:$0xff] %vm89, %v2261
  %2411 = vst.msk [vmem:[%s6 + $0x158] sm:$0xff] %vm89, %v2263
  %2412 = vst.msk [vmem:[%s6 + $0x160] sm:$0xff] %vm89, %v2265
  %2413 = vst.msk [vmem:[%s6 + $0x168] sm:$0xff] %vm89, %v2267
  %2414 = vst.msk [vmem:[%s6 + $0x170] sm:$0xff] %vm89, %v2269
  %2415 = vst.msk [vmem:[%s6 + $0x178] sm:$0xff] %vm89, %v2271
  %2416 = vst.msk [vmem:[%s6 + $0x180] sm:$0xff] %vm89, %v2273
  %2417 = vst.msk [vmem:[%s6 + $0x188] sm:$0xff] %vm89, %v2275
  %2418 = vst.msk [vmem:[%s6 + $0x190] sm:$0xff] %vm89, %v2277
  %2419 = vst.msk [vmem:[%s6 + $0x198] sm:$0xff] %vm89, %v2279
  %2420 = vst.msk [vmem:[%s6 + $0x1a0] sm:$0xff] %vm89, %v2281
  %2421 = vst.msk [vmem:[%s6 + $0x1a8] sm:$0xff] %vm89, %v2283
  %2422 = vst.msk [vmem:[%s6 + $0x1b0] sm:$0xff] %vm89, %v2285
  %2423 = vst.msk [vmem:[%s6 + $0x1b8] sm:$0xff] %vm89, %v2287
  %2424 = vst.msk [vmem:[%s6 + $0x1c0] sm:$0xff] %vm89, %v2289
  %2425 = vst.msk [vmem:[%s6 + $0x1c8] sm:$0xff] %vm89, %v2291
  %2426 = vst.msk [vmem:[%s6 + $0x1d0] sm:$0xff] %vm89, %v2293
  %2427 = vst.msk [vmem:[%s6 + $0x1d8] sm:$0xff] %vm89, %v2295
  %2428 = vst.msk [vmem:[%s6 + $0x1e0] sm:$0xff] %vm89, %v2297
  %2429 = vst.msk [vmem:[%s6 + $0x1e8] sm:$0xff] %vm89, %v2299
  %2430 = vst.msk [vmem:[%s6 + $0x1f0] sm:$0xff] %vm89, %v2301
  %2431 = vst.msk [vmem:[%s6 + $0x1f8] sm:$0xff] %vm89, %v2303
  %2432 = vrot.lane.b32.xlu0 %v1857, 64
  %v2433 = vpop.permute.xlu0 %2432
  %2434 = vrot.lane.b32.xlu0 %v1860, 64
  %v2435 = vpop.permute.xlu0 %2434
  %2436 = vrot.lane.b32.xlu0 %v1863, 64
  %v2437 = vpop.permute.xlu0 %2436
  %2438 = vrot.lane.b32.xlu0 %v1866, 64
  %v2439 = vpop.permute.xlu0 %2438
  %2440 = vrot.lane.b32.xlu0 %v1869, 64
  %v2441 = vpop.permute.xlu0 %2440
  %2442 = vrot.lane.b32.xlu0 %v1872, 64
  %v2443 = vpop.permute.xlu0 %2442
  %2444 = vrot.lane.b32.xlu0 %v1875, 64
  %v2445 = vpop.permute.xlu0 %2444
  %2446 = vrot.lane.b32.xlu0 %v1878, 64
  %v2447 = vpop.permute.xlu0 %2446
  %2448 = vrot.lane.b32.xlu0 %v1881, 64
  %v2449 = vpop.permute.xlu0 %2448
  %2450 = vrot.lane.b32.xlu0 %v1884, 64
  %v2451 = vpop.permute.xlu0 %2450
  %2452 = vrot.lane.b32.xlu0 %v1887, 64
  %v2453 = vpop.permute.xlu0 %2452
  %2454 = vrot.lane.b32.xlu0 %v1890, 64
  %v2455 = vpop.permute.xlu0 %2454
  %2456 = vrot.lane.b32.xlu0 %v1893, 64
  %v2457 = vpop.permute.xlu0 %2456
  %2458 = vrot.lane.b32.xlu0 %v1896, 64
  %v2459 = vpop.permute.xlu0 %2458
  %2460 = vrot.lane.b32.xlu0 %v1899, 64
  %v2461 = vpop.permute.xlu0 %2460
  %2462 = vrot.lane.b32.xlu0 %v1902, 64
  %v2463 = vpop.permute.xlu0 %2462
  %2464 = vrot.lane.b32.xlu0 %v1905, 64
  %v2465 = vpop.permute.xlu0 %2464
  %2466 = vrot.lane.b32.xlu0 %v1908, 64
  %v2467 = vpop.permute.xlu0 %2466
  %2468 = vrot.lane.b32.xlu0 %v1911, 64
  %v2469 = vpop.permute.xlu0 %2468
  %2470 = vrot.lane.b32.xlu0 %v1914, 64
  %v2471 = vpop.permute.xlu0 %2470
  %2472 = vrot.lane.b32.xlu0 %v1917, 64
  %v2473 = vpop.permute.xlu0 %2472
  %2474 = vrot.lane.b32.xlu0 %v1920, 64
  %v2475 = vpop.permute.xlu0 %2474
  %2476 = vrot.lane.b32.xlu0 %v1923, 64
  %v2477 = vpop.permute.xlu0 %2476
  %2478 = vrot.lane.b32.xlu0 %v1926, 64
  %v2479 = vpop.permute.xlu0 %2478
  %2480 = vrot.lane.b32.xlu0 %v1929, 64
  %v2481 = vpop.permute.xlu0 %2480
  %2482 = vrot.lane.b32.xlu0 %v1932, 64
  %v2483 = vpop.permute.xlu0 %2482
  %2484 = vrot.lane.b32.xlu0 %v1935, 64
  %v2485 = vpop.permute.xlu0 %2484
  %2486 = vrot.lane.b32.xlu0 %v1938, 64
  %v2487 = vpop.permute.xlu0 %2486
  %2488 = vrot.lane.b32.xlu0 %v1941, 64
  %v2489 = vpop.permute.xlu0 %2488
  %2490 = vrot.lane.b32.xlu0 %v1944, 64
  %v2491 = vpop.permute.xlu0 %2490
  %2492 = vrot.lane.b32.xlu0 %v1947, 64
  %v2493 = vpop.permute.xlu0 %2492
  %2494 = vrot.lane.b32.xlu0 %v1950, 64
  %v2495 = vpop.permute.xlu0 %2494
  %2496 = vrot.lane.b32.xlu0 %v1953, 64
  %v2497 = vpop.permute.xlu0 %2496
  %2498 = vrot.lane.b32.xlu0 %v1956, 64
  %v2499 = vpop.permute.xlu0 %2498
  %2500 = vrot.lane.b32.xlu0 %v1959, 64
  %v2501 = vpop.permute.xlu0 %2500
  %2502 = vrot.lane.b32.xlu0 %v1962, 64
  %v2503 = vpop.permute.xlu0 %2502
  %2504 = vrot.lane.b32.xlu0 %v1965, 64
  %v2505 = vpop.permute.xlu0 %2504
  %2506 = vrot.lane.b32.xlu0 %v1968, 64
  %v2507 = vpop.permute.xlu0 %2506
  %2508 = vrot.lane.b32.xlu0 %v1971, 64
  %v2509 = vpop.permute.xlu0 %2508
  %2510 = vrot.lane.b32.xlu0 %v1974, 64
  %v2511 = vpop.permute.xlu0 %2510
  %2512 = vrot.lane.b32.xlu0 %v1977, 64
  %v2513 = vpop.permute.xlu0 %2512
  %2514 = vrot.lane.b32.xlu0 %v1980, 64
  %v2515 = vpop.permute.xlu0 %2514
  %2516 = vrot.lane.b32.xlu0 %v1983, 64
  %v2517 = vpop.permute.xlu0 %2516
  %2518 = vrot.lane.b32.xlu0 %v1986, 64
  %v2519 = vpop.permute.xlu0 %2518
  %2520 = vrot.lane.b32.xlu0 %v1989, 64
  %v2521 = vpop.permute.xlu0 %2520
  %2522 = vrot.lane.b32.xlu0 %v1992, 64
  %v2523 = vpop.permute.xlu0 %2522
  %2524 = vrot.lane.b32.xlu0 %v1995, 64
  %v2525 = vpop.permute.xlu0 %2524
  %2526 = vrot.lane.b32.xlu0 %v1998, 64
  %v2527 = vpop.permute.xlu0 %2526
  %2528 = vrot.lane.b32.xlu0 %v2001, 64
  %v2529 = vpop.permute.xlu0 %2528
  %2530 = vrot.lane.b32.xlu0 %v2004, 64
  %v2531 = vpop.permute.xlu0 %2530
  %2532 = vrot.lane.b32.xlu0 %v2007, 64
  %v2533 = vpop.permute.xlu0 %2532
  %2534 = vrot.lane.b32.xlu0 %v2010, 64
  %v2535 = vpop.permute.xlu0 %2534
  %2536 = vrot.lane.b32.xlu0 %v2013, 64
  %v2537 = vpop.permute.xlu0 %2536
  %2538 = vrot.lane.b32.xlu0 %v2016, 64
  %v2539 = vpop.permute.xlu0 %2538
  %2540 = vrot.lane.b32.xlu0 %v2019, 64
  %v2541 = vpop.permute.xlu0 %2540
  %2542 = vrot.lane.b32.xlu0 %v2022, 64
  %v2543 = vpop.permute.xlu0 %2542
  %2544 = vrot.lane.b32.xlu0 %v2025, 64
  %v2545 = vpop.permute.xlu0 %2544
  %2546 = vrot.lane.b32.xlu0 %v2028, 64
  %v2547 = vpop.permute.xlu0 %2546
  %2548 = vrot.lane.b32.xlu0 %v2031, 64
  %v2549 = vpop.permute.xlu0 %2548
  %2550 = vrot.lane.b32.xlu0 %v2034, 64
  %v2551 = vpop.permute.xlu0 %2550
  %2552 = vrot.lane.b32.xlu0 %v2037, 64
  %v2553 = vpop.permute.xlu0 %2552
  %2554 = vrot.lane.b32.xlu0 %v2040, 64
  %v2555 = vpop.permute.xlu0 %2554
  %2556 = vrot.lane.b32.xlu0 %v2043, 64
  %v2557 = vpop.permute.xlu0 %2556
  %2558 = vrot.lane.b32.xlu0 %v2046, 64
  %v2559 = vpop.permute.xlu0 %2558
  %2624 = vst.msk [vmem:[%s7] sm:$0xff] %vm89, %v2433
  %2625 = vst.msk [vmem:[%s7 + $0x8] sm:$0xff] %vm89, %v2435
  %2626 = vst.msk [vmem:[%s7 + $0x10] sm:$0xff] %vm89, %v2437
  %2627 = vst.msk [vmem:[%s7 + $0x18] sm:$0xff] %vm89, %v2439
  %2628 = vst.msk [vmem:[%s7 + $0x20] sm:$0xff] %vm89, %v2441
  %2629 = vst.msk [vmem:[%s7 + $0x28] sm:$0xff] %vm89, %v2443
  %2630 = vst.msk [vmem:[%s7 + $0x30] sm:$0xff] %vm89, %v2445
  %2631 = vst.msk [vmem:[%s7 + $0x38] sm:$0xff] %vm89, %v2447
  %2632 = vst.msk [vmem:[%s7 + $0x40] sm:$0xff] %vm89, %v2449
  %2633 = vst.msk [vmem:[%s7 + $0x48] sm:$0xff] %vm89, %v2451
  %2634 = vst.msk [vmem:[%s7 + $0x50] sm:$0xff] %vm89, %v2453
  %2635 = vst.msk [vmem:[%s7 + $0x58] sm:$0xff] %vm89, %v2455
  %2636 = vst.msk [vmem:[%s7 + $0x60] sm:$0xff] %vm89, %v2457
  %2637 = vst.msk [vmem:[%s7 + $0x68] sm:$0xff] %vm89, %v2459
  %2638 = vst.msk [vmem:[%s7 + $0x70] sm:$0xff] %vm89, %v2461
  %2639 = vst.msk [vmem:[%s7 + $0x78] sm:$0xff] %vm89, %v2463
  %2640 = vst.msk [vmem:[%s7 + $0x80] sm:$0xff] %vm89, %v2465
  %2641 = vst.msk [vmem:[%s7 + $0x88] sm:$0xff] %vm89, %v2467
  %2642 = vst.msk [vmem:[%s7 + $0x90] sm:$0xff] %vm89, %v2469
  %2643 = vst.msk [vmem:[%s7 + $0x98] sm:$0xff] %vm89, %v2471
  %2644 = vst.msk [vmem:[%s7 + $0xa0] sm:$0xff] %vm89, %v2473
  %2645 = vst.msk [vmem:[%s7 + $0xa8] sm:$0xff] %vm89, %v2475
  %2646 = vst.msk [vmem:[%s7 + $0xb0] sm:$0xff] %vm89, %v2477
  %2647 = vst.msk [vmem:[%s7 + $0xb8] sm:$0xff] %vm89, %v2479
  %2648 = vst.msk [vmem:[%s7 + $0xc0] sm:$0xff] %vm89, %v2481
  %2649 = vst.msk [vmem:[%s7 + $0xc8] sm:$0xff] %vm89, %v2483
  %2650 = vst.msk [vmem:[%s7 + $0xd0] sm:$0xff] %vm89, %v2485
  %2651 = vst.msk [vmem:[%s7 + $0xd8] sm:$0xff] %vm89, %v2487
  %2652 = vst.msk [vmem:[%s7 + $0xe0] sm:$0xff] %vm89, %v2489
  %2653 = vst.msk [vmem:[%s7 + $0xe8] sm:$0xff] %vm89, %v2491
  %2654 = vst.msk [vmem:[%s7 + $0xf0] sm:$0xff] %vm89, %v2493
  %2655 = vst.msk [vmem:[%s7 + $0xf8] sm:$0xff] %vm89, %v2495
  %2656 = vst.msk [vmem:[%s7 + $0x100] sm:$0xff] %vm89, %v2497
  %2657 = vst.msk [vmem:[%s7 + $0x108] sm:$0xff] %vm89, %v2499
  %2658 = vst.msk [vmem:[%s7 + $0x110] sm:$0xff] %vm89, %v2501
  %2659 = vst.msk [vmem:[%s7 + $0x118] sm:$0xff] %vm89, %v2503
  %2660 = vst.msk [vmem:[%s7 + $0x120] sm:$0xff] %vm89, %v2505
  %2661 = vst.msk [vmem:[%s7 + $0x128] sm:$0xff] %vm89, %v2507
  %2662 = vst.msk [vmem:[%s7 + $0x130] sm:$0xff] %vm89, %v2509
  %2663 = vst.msk [vmem:[%s7 + $0x138] sm:$0xff] %vm89, %v2511
  %2664 = vst.msk [vmem:[%s7 + $0x140] sm:$0xff] %vm89, %v2513
  %2665 = vst.msk [vmem:[%s7 + $0x148] sm:$0xff] %vm89, %v2515
  %2666 = vst.msk [vmem:[%s7 + $0x150] sm:$0xff] %vm89, %v2517
  %2667 = vst.msk [vmem:[%s7 + $0x158] sm:$0xff] %vm89, %v2519
  %2668 = vst.msk [vmem:[%s7 + $0x160] sm:$0xff] %vm89, %v2521
  %2669 = vst.msk [vmem:[%s7 + $0x168] sm:$0xff] %vm89, %v2523
  %2670 = vst.msk [vmem:[%s7 + $0x170] sm:$0xff] %vm89, %v2525
  %2671 = vst.msk [vmem:[%s7 + $0x178] sm:$0xff] %vm89, %v2527
  %2672 = vst.msk [vmem:[%s7 + $0x180] sm:$0xff] %vm89, %v2529
  %2673 = vst.msk [vmem:[%s7 + $0x188] sm:$0xff] %vm89, %v2531
  %2674 = vst.msk [vmem:[%s7 + $0x190] sm:$0xff] %vm89, %v2533
  %2675 = vst.msk [vmem:[%s7 + $0x198] sm:$0xff] %vm89, %v2535
  %2676 = vst.msk [vmem:[%s7 + $0x1a0] sm:$0xff] %vm89, %v2537
  %2677 = vst.msk [vmem:[%s7 + $0x1a8] sm:$0xff] %vm89, %v2539
  %2678 = vst.msk [vmem:[%s7 + $0x1b0] sm:$0xff] %vm89, %v2541
  %2679 = vst.msk [vmem:[%s7 + $0x1b8] sm:$0xff] %vm89, %v2543
  %2680 = vst.msk [vmem:[%s7 + $0x1c0] sm:$0xff] %vm89, %v2545
  %2681 = vst.msk [vmem:[%s7 + $0x1c8] sm:$0xff] %vm89, %v2547
  %2682 = vst.msk [vmem:[%s7 + $0x1d0] sm:$0xff] %vm89, %v2549
  %2683 = vst.msk [vmem:[%s7 + $0x1d8] sm:$0xff] %vm89, %v2551
  %2684 = vst.msk [vmem:[%s7 + $0x1e0] sm:$0xff] %vm89, %v2553
  %2685 = vst.msk [vmem:[%s7 + $0x1e8] sm:$0xff] %vm89, %v2555
  %2686 = vst.msk [vmem:[%s7 + $0x1f0] sm:$0xff] %vm89, %v2557
  %2687 = vst.msk [vmem:[%s7 + $0x1f8] sm:$0xff] %vm89, %v2559
  // Predicated region
  $region22: #{tpu_custom_call.1} parent=0 // pred_check
    _
  $region23: #{tpu_custom_call.1} parent=0 // pred_check_branch
    %2689 = sbr.rel (0) target = $region25
  $region24: #{tpu_custom_call.1} parent=0 // pred_region
    _
  $region25: #{tpu_custom_call.1} parent=0 // pred_fallthru
    _
  // Predicated region
  $region26: #{tpu_custom_call.1} parent=0 // pred_check
    _
  $region27: #{tpu_custom_call.1} parent=0 // pred_check_branch
    %2691 = sbr.rel (0) target = $region29
  $region28: #{tpu_custom_call.1} parent=0 // pred_region
    _
  $region29: #{tpu_custom_call.1} parent=0 // pred_fallthru
    _
  // Predicated region
  $region30: #{tpu_custom_call.1} parent=0 // pred_check
    _
  $region31: #{tpu_custom_call.1} parent=0 // pred_check_branch
    %2693 = sbr.rel (0) target = $region33
  $region32: #{tpu_custom_call.1} parent=0 // pred_region
    _
  $region33: #{tpu_custom_call.1} parent=0 // pred_fallthru
    _
  // Predicated region
  $region34: #{tpu_custom_call.1} parent=0 // pred_check
    _
  $region35: #{tpu_custom_call.1} parent=0 // pred_check_branch
    %2695 = sbr.rel (0) target = $region37
  $region36: #{tpu_custom_call.1} parent=0 // pred_region
    _
  $region37: #{tpu_custom_call.1} parent=0 // pred_fallthru
    _
  // Predicated region
  $region38: #{tpu_custom_call.1} parent=0 // pred_check
    _
  $region39: #{tpu_custom_call.1} parent=0 // pred_check_branch
    %2697 = sbr.rel (0) target = $region41
  $region40: #{tpu_custom_call.1} parent=0 // pred_region
    _
  $region41: #{tpu_custom_call.1} parent=0 // pred_fallthru
    _
  // Predicated region
  $region42: #{tpu_custom_call.1} parent=0 // pred_check
    _
  $region43: #{tpu_custom_call.1} parent=0 // pred_check_branch
    %2699 = sbr.rel (0) target = $region45
  $region44: #{tpu_custom_call.1} parent=0 // pred_region
    _
  $region45: #{tpu_custom_call.1} parent=0 // pred_fallthru
    _

</llo_original>
